<compile_context>
chip_gen: v7x
topology: tpu7x:2x2x1
jax: 0.10.0
libtpu: 0.0.40
codegen_flags: <defaults>
</compile_context>

<pallas_src>
import functools

import jax
import jax.numpy as jnp
import numpy as np
from jax import lax
from jax.experimental import pallas as pl
from jax.experimental.pallas import tpu as pltpu

ELEM_LIST = ['C', 'N', 'O', 'S', 'F', 'Si', 'P', 'Cl', 'Br', 'Mg', 'Na', 'Ca',
             'Fe', 'Al', 'I', 'B', 'K', 'Se', 'Zn', 'H', 'Cu', 'Mn', 'unknown']
ATOM_FDIM = len(ELEM_LIST) + 6 + 5 + 4 + 1   # 39
BOND_FDIM = 5 + 6                            # 11
F_IN = ATOM_FDIM + BOND_FDIM                 # 50
ATOM_XDIM = ATOM_FDIM + 1                    # 40: constant-1 row folds the W_o bias


def _dot_f32_by_bf16(lhs_f32, rhs_bf16):
    """lhs(f32) @ rhs(bf16, 0/1 values) as two bf16 MXU passes with f32 accumulate.

    Avoids materializing an f32 copy of the adjacency (it goes to the MXU in its
    native bf16) while keeping ~f32 accuracy: lhs = hi + lo with hi = bf16(lhs);
    products against exact 0/1 entries are exact and accumulation is f32, so the
    only error is the ~2^-18 split residual — far inside the 1e-3 tolerance.
    """
    hi = lhs_f32.astype(jnp.bfloat16)
    lo = (lhs_f32 - hi.astype(jnp.float32)).astype(jnp.bfloat16)
    return (jnp.dot(hi, rhs_bf16, preferred_element_type=jnp.float32)
            + jnp.dot(lo, rhs_bf16, preferred_element_type=jnp.float32))


def _mpn_block_kernel(featT_ref, wi_ref, alineT_ref, wh_ref, xT_ref, aincT_ref,
                      woxb_ref, wom_ref, poolT_ref, outT_ref, *, depth):
    """One packed molecule block per grid step, transposed (H-major) layout.

    featT_ref  : (F_IN, E_b)       [src_x ; bond_x]^T per directed edge
    wi_ref     : (H, F_IN)         W_i
    alineT_ref : (E_b, E_b) bf16   alineT[e', e] = 1 iff e' -> e (no backtracking)
    wh_ref     : (H, H)            W_h
    xT_ref     : (ATOM_XDIM, N_b)  atom features^T with a constant-1 row appended
    aincT_ref  : (E_b, N_b) bf16   aincT[e, v] = 1 iff dst(e) == v
    woxb_ref   : (H, ATOM_XDIM)    W_o atom half with b_o folded as last column
    wom_ref    : (H, H)            W_o message half
    poolT_ref  : (N_b, GB)         per-graph mean-pool weights (transposed)
    outT_ref   : (H, GB)           graph representations of this block (transposed)
    """
    f32 = jnp.float32

    # msg_input^T = W_i @ feat^T : (H, E_b), lane-dense in the edge dim.
    msg_inputT = jnp.dot(wi_ref[...], featT_ref[...], preferred_element_type=f32)
    msgT = jnp.maximum(msg_inputT, 0.0)

    alineT = alineT_ref[...]          # bf16 0/1, fed straight to the MXU
    wh = wh_ref[...]

    def bp_round(_, m):
        # accum^T = msg^T @ aline^T : sum over incoming line-graph edges.
        accumT = _dot_f32_by_bf16(m, alineT)                       # (H, E_b)
        deltaT = jnp.dot(wh, accumT, preferred_element_type=f32)
        return jnp.maximum(msg_inputT + deltaT, 0.0)

    msgT = lax.fori_loop(0, depth - 1, bp_round, msgT, unroll=True)

    # m^T[:, v] = sum of messages on edges whose destination is v.
    mT = _dot_f32_by_bf16(msgT, aincT_ref[...])                    # (H, N_b)

    # h^T = relu(W_o_xb @ x~^T + W_o_m @ m^T)   (bias comes via the ones row)
    hT = jnp.maximum(
        jnp.dot(woxb_ref[...], xT_ref[...], preferred_element_type=f32)
        + jnp.dot(wom_ref[...], mT, preferred_element_type=f32), 0.0)

    # Per-graph mean pooling as a plain A @ B MXU matmul: (H, N_b) @ (N_b, GB).
    outT_ref[...] = jnp.dot(hT, poolT_ref[...], preferred_element_type=f32)


def dgl_mpn_forward(featT, w_i, a_lineT, w_h, xT, a_incT, w_oxb, w_om, poolT,
                    *, depth):
    num_blocks, f_in, e_b = featT.shape
    n_b = a_incT.shape[2]
    gb = poolT.shape[2]
    h = w_i.shape[0]
    xdim = xT.shape[1]

    in_specs = [
        pl.BlockSpec((None, f_in, e_b), lambda i: (i, 0, 0)),    # featT (contiguous per-block DMA)
        pl.BlockSpec((h, f_in), lambda i: (0, 0)),               # W_i
        pl.BlockSpec((None, e_b, e_b), lambda i: (i, 0, 0)),     # a_lineT (bf16)
        pl.BlockSpec((h, h), lambda i: (0, 0)),                  # W_h
        pl.BlockSpec((None, xdim, n_b), lambda i: (i, 0, 0)),    # xT (ones row appended)
        pl.BlockSpec((None, e_b, n_b), lambda i: (i, 0, 0)),     # a_incT (bf16)
        pl.BlockSpec((h, xdim), lambda i: (0, 0)),               # W_o_xb (bias folded)
        pl.BlockSpec((h, h), lambda i: (0, 0)),                  # W_o_m
        pl.BlockSpec((None, n_b, gb), lambda i: (i, 0, 0)),      # poolT
    ]
    out_specs = pl.BlockSpec((None, h, gb), lambda i: (i, 0, 0))

    flops = 2 * num_blocks * (
        h * f_in * e_b
        + (depth - 1) * (2 * h * e_b * e_b + h * h * e_b)
        + 2 * h * e_b * n_b
        + h * xdim * n_b + h * h * n_b
        + h * n_b * gb)
    bytes_accessed = sum(int(np.prod(a.shape)) * a.dtype.itemsize
                         for a in (featT, w_i, a_lineT, w_h, xT, a_incT,
                                   w_oxb, w_om, poolT))
    bytes_accessed += num_blocks * h * gb * 4

    return pl.pallas_call(
        functools.partial(_mpn_block_kernel, depth=depth),
        out_shape=jax.ShapeDtypeStruct((num_blocks, h, gb), jnp.float32),
        grid=(num_blocks,),
        in_specs=in_specs,
        out_specs=out_specs,
        compiler_params=pltpu.CompilerParams(
            dimension_semantics=("parallel",)),       # split blocks across TCs
        cost_estimate=pl.CostEstimate(flops=int(flops), transcendentals=0,
                                      bytes_accessed=int(bytes_accessed)),
    )(featT, w_i, a_lineT, w_h, xT, a_incT, w_oxb, w_om, poolT)


def reference_forward(features, w_i, a_line, w_h, x, a_inc,
                      w_o_x, w_o_m, b_o_row, pool, *, depth):
    """Pure-JAX f32 reference in the original (row-major, un-blocked) layout."""
    msg_input = features @ w_i.T
    msg = jnp.maximum(msg_input, 0.0)
    for _ in range(depth - 1):
        accum = a_line @ msg
        msg = jnp.maximum(msg_input + accum @ w_h.T, 0.0)
    m = a_inc @ msg
    hh = jnp.maximum(x @ w_o_x.T + m @ w_o_m.T + b_o_row, 0.0)
    return pool @ hh


if __name__ == "__main__":
    hidden_size = 32
    depth = 3
    E_B, N_B = 128, 128     # per-block padded edge / node budget (MXU-width lanes)
    GB_MAX = 64             # hard cap on graphs per block (packing is edge/node limited)

    # TODO(synk): DGL batching / line-graph construction and RDKit atom/bond
    # featurization have no Pallas equivalent; graph structure is built on the
    # host as dense per-block incidence matrices over synthetic molecules.
    def _ring(n):
        eds = []
        for i in range(n):
            j = (i + 1) % n
            eds.append((i, j)); eds.append((j, i))
        return n, eds

    def _chain(n):
        eds = []
        for i in range(n - 1):
            eds.append((i, i + 1)); eds.append((i + 1, i))
        return n, eds

    mols = []
    for _rep in range(6):
        for n in (3, 4, 5, 6, 7, 8):
            mols.append(_ring(n)); mols.append(_chain(n))
    n_graphs = len(mols)                                  # 72 small molecules

    n_nodes_list = [m[0] for m in mols]
    n_edges_list = [len(m[1]) for m in mols]
    node_off = np.concatenate([[0], np.cumsum(n_nodes_list)]).astype(np.int64)
    edge_off = np.concatenate([[0], np.cumsum(n_edges_list)]).astype(np.int64)
    n_nodes = int(node_off[-1]); n_edges = int(edge_off[-1])

    # Deterministic synthetic features and weights.
    key = jax.random.PRNGKey(0)
    k_x, k_b, k_wi, k_wh, k_wo, k_bo = jax.random.split(key, 6)
    atom_x = jax.random.uniform(k_x, (n_nodes, ATOM_FDIM), dtype=jnp.float32)
    bond_x = jax.random.uniform(k_b, (n_edges, BOND_FDIM), dtype=jnp.float32)
    in_o = ATOM_FDIM + hidden_size
    w_i = jax.random.normal(k_wi, (hidden_size, F_IN), dtype=jnp.float32) / np.sqrt(F_IN)
    w_h = jax.random.normal(k_wh, (hidden_size, hidden_size), dtype=jnp.float32) / np.sqrt(hidden_size)
    w_o = jax.random.normal(k_wo, (hidden_size, in_o), dtype=jnp.float32) / np.sqrt(in_o)
    b_o = jax.random.normal(k_bo, (hidden_size,), dtype=jnp.float32) / np.sqrt(in_o)
    w_o_x = w_o[:, :ATOM_FDIM]                       # (H, ATOM_FDIM)
    w_o_m = w_o[:, ATOM_FDIM:]                       # (H, H)
    w_oxb = jnp.concatenate([w_o_x, b_o[:, None]], axis=1)   # (H, ATOM_XDIM), bias folded
    b_o_row = b_o.reshape(1, hidden_size)            # (1, H) for the reference

    atom_x_np = np.asarray(atom_x)
    bond_x_np = np.asarray(bond_x)

    # ---- greedy block packing: fill each block's edge/node budget before
    #      opening a new one (variable number of graphs per block). ----
    blocks = []
    cur, cur_e, cur_n = [], 0, 0
    for mi in range(n_graphs):
        ne, nn = n_edges_list[mi], n_nodes_list[mi]
        if cur and (cur_e + ne > E_B or cur_n + nn > N_B or len(cur) >= GB_MAX):
            blocks.append(cur); cur, cur_e, cur_n = [], 0, 0
        cur.append(mi); cur_e += ne; cur_n += nn
    if cur:
        blocks.append(cur)
    num_blocks = len(blocks)
    GB = int(-(-max(len(b) for b in blocks) // 8) * 8)   # graph slots padded to x8

    featT_np = np.zeros((num_blocks, F_IN, E_B), np.float32)
    xT_np = np.zeros((num_blocks, ATOM_XDIM, N_B), np.float32)
    alineT_np = np.zeros((num_blocks, E_B, E_B), np.float32)
    aincT_np = np.zeros((num_blocks, E_B, N_B), np.float32)
    poolT_np = np.zeros((num_blocks, N_B, GB), np.float32)
    graph_loc = [None] * n_graphs

    for b, mol_ids in enumerate(blocks):
        xT_np[b, ATOM_FDIM, :] = 1.0               # constant-1 row -> W_o bias
        src_loc, dst_loc = [], []
        node_base = 0
        for slot, mi in enumerate(mol_ids):
            nn, eds = mols[mi]
            gn0, ge0 = int(node_off[mi]), int(edge_off[mi])
            graph_loc[mi] = (b, slot)
            for v in range(nn):
                xT_np[b, :ATOM_FDIM, node_base + v] = atom_x_np[gn0 + v]
                poolT_np[b, node_base + v, slot] = 1.0 / nn
            for k, (s, d) in enumerate(eds):
                e = len(src_loc)
                featT_np[b, :ATOM_FDIM, e] = atom_x_np[gn0 + s]
                featT_np[b, ATOM_FDIM:, e] = bond_x_np[ge0 + k]
                aincT_np[b, e, node_base + d] = 1.0
                src_loc.append(node_base + s); dst_loc.append(node_base + d)
            node_base += nn
        src = np.asarray(src_loc); dst = np.asarray(dst_loc); ne_blk = len(src_loc)
        # alineT[e', e] = 1 iff dst(e') == src(e) and src(e') != dst(e)
        mask = (dst[:, None] == src[None, :]) & (src[:, None] != dst[None, :])
        alineT_np[b, :ne_blk, :ne_blk] = mask.astype(np.float32)

    featT = jnp.asarray(featT_np)                              # (B, F_IN, E_B)
    xT = jnp.asarray(xT_np)                                    # (B, ATOM_XDIM, N_B)
    a_lineT = jnp.asarray(alineT_np, dtype=jnp.bfloat16)       # 0/1 exact in bf16
    a_incT = jnp.asarray(aincT_np, dtype=jnp.bfloat16)
    poolT = jnp.asarray(poolT_np)                              # (B, N_B, GB)

    outT = dgl_mpn_forward(featT, w_i, a_lineT, w_h, xT, a_incT,
                           w_oxb, w_o_m, poolT, depth=depth)
    outT = jax.block_until_ready(outT)                         # (B, H, GB)

    outT_np = np.asarray(outT)
    g_repr = np.stack([outT_np[b, :, s] for (b, s) in graph_loc], axis=0)

    # ---- global dense pure-JAX f32 reference (original, un-blocked layout) ----
    src_g = np.array([int(node_off[g]) + s
                      for g, (_, eds) in enumerate(mols) for (s, _) in eds])
    dst_g = np.array([int(node_off[g]) + d
                      for g, (_, eds) in enumerate(mols) for (_, d) in eds])
    a_line_g = ((dst_g[None, :] == src_g[:, None]) &
                (src_g[None, :] != dst_g[:, None])).astype(np.float32)
    a_inc_g = np.zeros((n_nodes, n_edges), np.float32)
    a_inc_g[dst_g, np.arange(n_edges)] = 1.0
    pool_g = np.zeros((n_graphs, n_nodes), np.float32)
    for g in range(n_graphs):
        pool_g[g, node_off[g]:node_off[g + 1]] = 1.0 / n_nodes_list[g]
    features_g = np.concatenate([atom_x_np[src_g], bond_x_np], axis=1)

    ref = reference_forward(jnp.asarray(features_g), w_i, jnp.asarray(a_line_g),
                            w_h, atom_x, jnp.asarray(a_inc_g),
                            w_o_x, w_o_m, b_o_row, jnp.asarray(pool_g), depth=depth)
    ref = jax.block_until_ready(ref)

    assert g_repr.shape == (n_graphs, hidden_size)
    np.testing.assert_allclose(g_repr, np.asarray(ref), rtol=1e-3, atol=1e-3)
    print("KERNEL_OK")
</pallas_src>

<mosaic_0001>
module attributes {stable_mosaic.version = 11 : i64} {
  func.func @_mpn_block_kernel(%arg0: i32, %arg1: memref<1x50x128xf32, #tpu.memory_space<vmem>>, %arg2: memref<32x50xf32, #tpu.memory_space<vmem>>, %arg3: memref<1x128x128xbf16, #tpu.memory_space<vmem>>, %arg4: memref<32x32xf32, #tpu.memory_space<vmem>>, %arg5: memref<1x40x128xf32, #tpu.memory_space<vmem>>, %arg6: memref<1x128x128xbf16, #tpu.memory_space<vmem>>, %arg7: memref<32x40xf32, #tpu.memory_space<vmem>>, %arg8: memref<32x32xf32, #tpu.memory_space<vmem>>, %arg9: memref<1x128x16xf32, #tpu.memory_space<vmem>>, %arg10: memref<1x32x16xf32, #tpu.memory_space<vmem>>) attributes {dimension_semantics = [#tpu.dimension_semantics<parallel>], iteration_bounds = array<i64: 6>, scalar_prefetch = 0 : i64, scratch_operands = 0 : i64, tpu.core_type = #tpu.core_type<tc>, window_params = [{transform_indices = @transform_0, window_bounds = array<i64: 1, 50, 128>}, {pipeline_mode = #tpu.pipeline_mode<synchronous>, transform_indices = @transform_1, window_bounds = array<i64: 32, 50>}, {transform_indices = @transform_2, window_bounds = array<i64: 1, 128, 128>}, {pipeline_mode = #tpu.pipeline_mode<synchronous>, transform_indices = @transform_3, window_bounds = array<i64: 32, 32>}, {transform_indices = @transform_4, window_bounds = array<i64: 1, 40, 128>}, {transform_indices = @transform_5, window_bounds = array<i64: 1, 128, 128>}, {pipeline_mode = #tpu.pipeline_mode<synchronous>, transform_indices = @transform_6, window_bounds = array<i64: 32, 40>}, {pipeline_mode = #tpu.pipeline_mode<synchronous>, transform_indices = @transform_7, window_bounds = array<i64: 32, 32>}, {transform_indices = @transform_8, window_bounds = array<i64: 1, 128, 16>}, {transform_indices = @transform_9, window_bounds = array<i64: 1, 32, 16>}]} {
    %c0 = arith.constant 0 : index
    %c0_0 = arith.constant 0 : index
    %0 = vector.load %arg2[%c0, %c0_0] : memref<32x50xf32, #tpu.memory_space<vmem>>, vector<32x50xf32>
    %c0_1 = arith.constant 0 : index
    %c0_2 = arith.constant 0 : index
    %c0_3 = arith.constant 0 : index
    %1 = vector.load %arg1[%c0_1, %c0_2, %c0_3] : memref<1x50x128xf32, #tpu.memory_space<vmem>>, vector<1x50x128xf32>
    %2 = vector.shape_cast %1 : vector<1x50x128xf32> to vector<50x128xf32>
    %cst = arith.constant dense<0.000000e+00> : vector<32x128xf32>
    %3 = tpu.matmul %0, %2, %cst {dimension_numbers = #tpu.dot_dimension_numbers<[1], [0], [0], [1], [0, 0, 1, 1], [], []>} : vector<32x50xf32>, vector<50x128xf32>, vector<32x128xf32> -> vector<32x128xf32>
    %cst_4 = arith.constant 0.000000e+00 : f32
    %4 = vector.broadcast %cst_4 : f32 to vector<32x128xf32>
    %5 = arith.maximumf %3, %4 : vector<32x128xf32>
    %c0_5 = arith.constant 0 : index
    %c0_6 = arith.constant 0 : index
    %c0_7 = arith.constant 0 : index
    %6 = vector.load %arg3[%c0_5, %c0_6, %c0_7] : memref<1x128x128xbf16, #tpu.memory_space<vmem>>, vector<1x128x128xbf16>
    %7 = vector.shape_cast %6 : vector<1x128x128xbf16> to vector<128x128xbf16>
    %c0_8 = arith.constant 0 : index
    %c0_9 = arith.constant 0 : index
    %8 = vector.load %arg4[%c0_8, %c0_9] : memref<32x32xf32, #tpu.memory_space<vmem>>, vector<32x32xf32>
    %c0_i32 = arith.constant 0 : i32
    %9 = arith.truncf %5 : vector<32x128xf32> to vector<32x128xbf16>
    %10 = arith.extf %9 : vector<32x128xbf16> to vector<32x128xf32>
    %11 = arith.subf %5, %10 : vector<32x128xf32>
    %12 = arith.truncf %11 : vector<32x128xf32> to vector<32x128xbf16>
    %cst_10 = arith.constant dense<0.000000e+00> : vector<32x128xf32>
    %13 = tpu.matmul %9, %7, %cst_10 {dimension_numbers = #tpu.dot_dimension_numbers<[1], [0], [0], [1], [0, 0, 1, 1], [], []>} : vector<32x128xbf16>, vector<128x128xbf16>, vector<32x128xf32> -> vector<32x128xf32>
    %cst_11 = arith.constant dense<0.000000e+00> : vector<32x128xf32>
    %14 = tpu.matmul %12, %7, %cst_11 {dimension_numbers = #tpu.dot_dimension_numbers<[1], [0], [0], [1], [0, 0, 1, 1], [], []>} : vector<32x128xbf16>, vector<128x128xbf16>, vector<32x128xf32> -> vector<32x128xf32>
    %15 = arith.addf %13, %14 : vector<32x128xf32>
    %cst_12 = arith.constant dense<0.000000e+00> : vector<32x128xf32>
    %16 = tpu.matmul %8, %15, %cst_12 {dimension_numbers = #tpu.dot_dimension_numbers<[1], [0], [0], [1], [0, 0, 1, 1], [], []>} : vector<32x32xf32>, vector<32x128xf32>, vector<32x128xf32> -> vector<32x128xf32>
    %17 = arith.addf %3, %16 : vector<32x128xf32>
    %cst_13 = arith.constant 0.000000e+00 : f32
    %18 = vector.broadcast %cst_13 : f32 to vector<32x128xf32>
    %19 = arith.maximumf %17, %18 : vector<32x128xf32>
    %c1_i32 = arith.constant 1 : i32
    %20 = arith.truncf %19 : vector<32x128xf32> to vector<32x128xbf16>
    %21 = arith.extf %20 : vector<32x128xbf16> to vector<32x128xf32>
    %22 = arith.subf %19, %21 : vector<32x128xf32>
    %23 = arith.truncf %22 : vector<32x128xf32> to vector<32x128xbf16>
    %cst_14 = arith.constant dense<0.000000e+00> : vector<32x128xf32>
    %24 = tpu.matmul %20, %7, %cst_14 {dimension_numbers = #tpu.dot_dimension_numbers<[1], [0], [0], [1], [0, 0, 1, 1], [], []>} : vector<32x128xbf16>, vector<128x128xbf16>, vector<32x128xf32> -> vector<32x128xf32>
    %cst_15 = arith.constant dense<0.000000e+00> : vector<32x128xf32>
    %25 = tpu.matmul %23, %7, %cst_15 {dimension_numbers = #tpu.dot_dimension_numbers<[1], [0], [0], [1], [0, 0, 1, 1], [], []>} : vector<32x128xbf16>, vector<128x128xbf16>, vector<32x128xf32> -> vector<32x128xf32>
    %26 = arith.addf %24, %25 : vector<32x128xf32>
    %cst_16 = arith.constant dense<0.000000e+00> : vector<32x128xf32>
    %27 = tpu.matmul %8, %26, %cst_16 {dimension_numbers = #tpu.dot_dimension_numbers<[1], [0], [0], [1], [0, 0, 1, 1], [], []>} : vector<32x32xf32>, vector<32x128xf32>, vector<32x128xf32> -> vector<32x128xf32>
    %28 = arith.addf %3, %27 : vector<32x128xf32>
    %cst_17 = arith.constant 0.000000e+00 : f32
    %29 = vector.broadcast %cst_17 : f32 to vector<32x128xf32>
    %30 = arith.maximumf %28, %29 : vector<32x128xf32>
    %c0_18 = arith.constant 0 : index
    %c0_19 = arith.constant 0 : index
    %c0_20 = arith.constant 0 : index
    %31 = vector.load %arg6[%c0_18, %c0_19, %c0_20] : memref<1x128x128xbf16, #tpu.memory_space<vmem>>, vector<1x128x128xbf16>
    %32 = vector.shape_cast %31 : vector<1x128x128xbf16> to vector<128x128xbf16>
    %33 = arith.truncf %30 : vector<32x128xf32> to vector<32x128xbf16>
    %34 = arith.extf %33 : vector<32x128xbf16> to vector<32x128xf32>
    %35 = arith.subf %30, %34 : vector<32x128xf32>
    %36 = arith.truncf %35 : vector<32x128xf32> to vector<32x128xbf16>
    %cst_21 = arith.constant dense<0.000000e+00> : vector<32x128xf32>
    %37 = tpu.matmul %33, %32, %cst_21 {dimension_numbers = #tpu.dot_dimension_numbers<[1], [0], [0], [1], [0, 0, 1, 1], [], []>} : vector<32x128xbf16>, vector<128x128xbf16>, vector<32x128xf32> -> vector<32x128xf32>
    %cst_22 = arith.constant dense<0.000000e+00> : vector<32x128xf32>
    %38 = tpu.matmul %36, %32, %cst_22 {dimension_numbers = #tpu.dot_dimension_numbers<[1], [0], [0], [1], [0, 0, 1, 1], [], []>} : vector<32x128xbf16>, vector<128x128xbf16>, vector<32x128xf32> -> vector<32x128xf32>
    %39 = arith.addf %37, %38 : vector<32x128xf32>
    %c0_23 = arith.constant 0 : index
    %c0_24 = arith.constant 0 : index
    %40 = vector.load %arg7[%c0_23, %c0_24] : memref<32x40xf32, #tpu.memory_space<vmem>>, vector<32x40xf32>
    %c0_25 = arith.constant 0 : index
    %c0_26 = arith.constant 0 : index
    %c0_27 = arith.constant 0 : index
    %41 = vector.load %arg5[%c0_25, %c0_26, %c0_27] : memref<1x40x128xf32, #tpu.memory_space<vmem>>, vector<1x40x128xf32>
    %42 = vector.shape_cast %41 : vector<1x40x128xf32> to vector<40x128xf32>
    %cst_28 = arith.constant dense<0.000000e+00> : vector<32x128xf32>
    %43 = tpu.matmul %40, %42, %cst_28 {dimension_numbers = #tpu.dot_dimension_numbers<[1], [0], [0], [1], [0, 0, 1, 1], [], []>} : vector<32x40xf32>, vector<40x128xf32>, vector<32x128xf32> -> vector<32x128xf32>
    %c0_29 = arith.constant 0 : index
    %c0_30 = arith.constant 0 : index
    %44 = vector.load %arg8[%c0_29, %c0_30] : memref<32x32xf32, #tpu.memory_space<vmem>>, vector<32x32xf32>
    %cst_31 = arith.constant dense<0.000000e+00> : vector<32x128xf32>
    %45 = tpu.matmul %44, %39, %cst_31 {dimension_numbers = #tpu.dot_dimension_numbers<[1], [0], [0], [1], [0, 0, 1, 1], [], []>} : vector<32x32xf32>, vector<32x128xf32>, vector<32x128xf32> -> vector<32x128xf32>
    %46 = arith.addf %43, %45 : vector<32x128xf32>
    %cst_32 = arith.constant 0.000000e+00 : f32
    %47 = vector.broadcast %cst_32 : f32 to vector<32x128xf32>
    %48 = arith.maximumf %46, %47 : vector<32x128xf32>
    %c0_33 = arith.constant 0 : index
    %c0_34 = arith.constant 0 : index
    %c0_35 = arith.constant 0 : index
    %49 = vector.load %arg9[%c0_33, %c0_34, %c0_35] : memref<1x128x16xf32, #tpu.memory_space<vmem>>, vector<1x128x16xf32>
    %50 = vector.shape_cast %49 : vector<1x128x16xf32> to vector<128x16xf32>
    %cst_36 = arith.constant dense<0.000000e+00> : vector<32x16xf32>
    %51 = tpu.matmul %48, %50, %cst_36 {dimension_numbers = #tpu.dot_dimension_numbers<[1], [0], [0], [1], [0, 0, 1, 1], [], []>} : vector<32x128xf32>, vector<128x16xf32>, vector<32x16xf32> -> vector<32x16xf32>
    %c0_37 = arith.constant 0 : index
    %c0_38 = arith.constant 0 : index
    %c0_39 = arith.constant 0 : index
    %52 = vector.load %arg10[%c0_37, %c0_38, %c0_39] : memref<1x32x16xf32, #tpu.memory_space<vmem>>, vector<1x32x16xf32>
    %53 = vector.shape_cast %52 : vector<1x32x16xf32> to vector<32x16xf32>
    %54 = vector.shape_cast %51 : vector<32x16xf32> to vector<1x32x16xf32>
    tpu.vector_store %arg10[%c0_37, %c0_38, %c0_39], %54 {strides = array<i32>} : memref<1x32x16xf32, #tpu.memory_space<vmem>>, vector<1x32x16xf32>,
    return
  }
  func.func @transform_0(%arg0: i32) -> (i32, i32, i32) {
    %c0_i32 = arith.constant 0 : i32
    %c0_i32_0 = arith.constant 0 : i32
    %c0_i32_1 = arith.constant 0 : i32
    return %arg0, %c0_i32, %c0_i32_0 : i32, i32, i32
  }
  func.func @transform_1(%arg0: i32) -> (i32, i32) {
    %c0_i32 = arith.constant 0 : i32
    %c0_i32_0 = arith.constant 0 : i32
    %c0_i32_1 = arith.constant 0 : i32
    return %c0_i32, %c0_i32_0 : i32, i32
  }
  func.func @transform_2(%arg0: i32) -> (i32, i32, i32) {
    %c0_i32 = arith.constant 0 : i32
    %c0_i32_0 = arith.constant 0 : i32
    %c0_i32_1 = arith.constant 0 : i32
    return %arg0, %c0_i32, %c0_i32_0 : i32, i32, i32
  }
  func.func @transform_3(%arg0: i32) -> (i32, i32) {
    %c0_i32 = arith.constant 0 : i32
    %c0_i32_0 = arith.constant 0 : i32
    %c0_i32_1 = arith.constant 0 : i32
    return %c0_i32, %c0_i32_0 : i32, i32
  }
  func.func @transform_4(%arg0: i32) -> (i32, i32, i32) {
    %c0_i32 = arith.constant 0 : i32
    %c0_i32_0 = arith.constant 0 : i32
    %c0_i32_1 = arith.constant 0 : i32
    return %arg0, %c0_i32, %c0_i32_0 : i32, i32, i32
  }
  func.func @transform_5(%arg0: i32) -> (i32, i32, i32) {
    %c0_i32 = arith.constant 0 : i32
    %c0_i32_0 = arith.constant 0 : i32
    %c0_i32_1 = arith.constant 0 : i32
    return %arg0, %c0_i32, %c0_i32_0 : i32, i32, i32
  }
  func.func @transform_6(%arg0: i32) -> (i32, i32) {
    %c0_i32 = arith.constant 0 : i32
    %c0_i32_0 = arith.constant 0 : i32
    %c0_i32_1 = arith.constant 0 : i32
    return %c0_i32, %c0_i32_0 : i32, i32
  }
  func.func @transform_7(%arg0: i32) -> (i32, i32) {
    %c0_i32 = arith.constant 0 : i32
    %c0_i32_0 = arith.constant 0 : i32
    %c0_i32_1 = arith.constant 0 : i32
    return %c0_i32, %c0_i32_0 : i32, i32
  }
  func.func @transform_8(%arg0: i32) -> (i32, i32, i32) {
    %c0_i32 = arith.constant 0 : i32
    %c0_i32_0 = arith.constant 0 : i32
    %c0_i32_1 = arith.constant 0 : i32
    return %arg0, %c0_i32, %c0_i32_0 : i32, i32, i32
  }
  func.func @transform_9(%arg0: i32) -> (i32, i32, i32) {
    %c0_i32 = arith.constant 0 : i32
    %c0_i32_0 = arith.constant 0 : i32
    %c0_i32_1 = arith.constant 0 : i32
    return %arg0, %c0_i32, %c0_i32_0 : i32, i32, i32
  }
}

</mosaic_0001>

<llo_original>
// kernel: tpu_custom_call.1
$region0: #{tpu_custom_call.1}
  #allocation0 [shape = 'u32[]', space=smem, size = 0x4, offset = 0x4, fixed_abs, tag = 'smem constant byte address 0x4 - core index']
  #allocation1 [shape = 'u32[144,128]{1,0:T(1,128)}', space=vmem, size = 0x12000, scoped, tag = 'internal scratch']
  %s0 = inlined_call_operand.hbm [shape: f32[6,50,128], index: 0, kind: input, shape index: {}]
  %s1 = inlined_call_operand.vmem [shape: f32[32,50], index: 1, kind: input, shape index: {}]
  %s2 = inlined_call_operand.vmem [shape: bf16[6,128,128], index: 2, kind: input, shape index: {}]
  %s3 = inlined_call_operand.vmem [shape: f32[32,32], index: 3, kind: input, shape index: {}]
  %s4 = inlined_call_operand.hbm [shape: f32[6,40,128], index: 4, kind: input, shape index: {}]
  %s5 = inlined_call_operand.vmem [shape: bf16[6,128,128], index: 5, kind: input, shape index: {}]
  %s6 = inlined_call_operand.vmem [shape: f32[32,40], index: 6, kind: input, shape index: {}]
  %s7 = inlined_call_operand.hbm [shape: f32[32,32], index: 7, kind: input, shape index: {}]
  %s8 = inlined_call_operand.vmem [shape: f32[6,128,16], index: 8, kind: input, shape index: {}]
  %s9 = inlined_call_operand.vmem [shape: f32[6,32,16], index: 9, kind: output, shape index: {}]
  %s10 = sld [smem:[#allocation0]]
  $region81: #{tpu_custom_call.1} parent=0
    _
  %s12 = ssub.s32 1, %s10
  %s13 = scalar_select 0, %s12, %s10
  $region1: #{tpu_custom_call.1} parent=0
    #allocation2 [shape = 'u8[57344]{0}', space=vmem, size = 0xe000, scoped, tag = 'input window, operand 0']
    #allocation3 [shape = 's32[2]{0}', space=sflag, size = 0x8, scoped, tag = 'scoped memory for tpu_custom_call.1']
    #allocation4 [shape = 'u8[40960]{0}', space=vmem, size = 0xa000, scoped, tag = 'input window, operand 4']
    #allocation5 [shape = 's32[2]{0}', space=sflag, size = 0x8, scoped, tag = 'scoped memory for tpu_custom_call.1']
    #allocation6 [shape = 'u8[16384]{0}', space=vmem, size = 0x4000, scoped, tag = 'input window, operand 7, single buffered']
    %14 = vsyncpa [#allocation3], 0
    %s15 = scalar_lea.sflag [#allocation3], 1
    %16 = vsyncpa %s15, 0
    %17 = vsyncpa [#allocation5], 0
    %s18 = scalar_lea.sflag [#allocation5], 1
    %19 = vsyncpa %s18, 0
    loop: start=0, step=1, limit=8
    $region2: #{tpu_custom_call.1} parent=1 // loop_pre_header
      _
    $region3: #{tpu_custom_call.1} parent=1 // loop_header
      %s21 = sphi 0, %s25
      %p22 = scmp.ge.s32.totalorder %s21, 8
      %s31 = sphi 0, %s33
      %s34 = sphi 0, %s31
      %s35 = sphi 0, %s34
      %s51 = sphi 0, %s35
      %s55 = sphi 0, %s55
      %s57 = sphi 0, %s55
      %s58 = sphi 0, %s57
      %s72 = sphi 0, %s58
      %s78 = sphi 0, %s80
      %s81 = sphi 0, %s78
      %s82 = sphi 0, %s81
      %s98 = sphi 0, %s82
      %s102 = sphi 0, %s102
      %s104 = sphi 0, %s102
      %s105 = sphi 0, %s104
      %s119 = sphi 0, %s105
      %s125 = sphi 0, %s127
      %s128 = sphi 0, %s125
      %s129 = sphi 0, %s128
      %s145 = sphi 0, %s129
      %s151 = sphi 0, %s153
      %s154 = sphi 0, %s151
      %s155 = sphi 0, %s154
      %s171 = sphi 0, %s155
      %s175 = sphi 0, %s175
      %s177 = sphi 0, %s175
      %s178 = sphi 0, %s177
      %s192 = sphi 0, %s178
      %s196 = sphi 0, %s196
      %s198 = sphi 0, %s196
      %s199 = sphi 0, %s198
      %s213 = sphi 0, %s199
      %s219 = sphi 0, %s221
      %s222 = sphi 0, %s219
      %s223 = sphi 0, %s222
      %s239 = sphi 0, %s223
      %s245 = sphi 0, %s247
      %s248 = sphi 0, %s245
      %s249 = sphi 0, %s248
      %s265 = sphi 0, %s249
    $region4: #{tpu_custom_call.1} parent=1 // loop_header_branch
      %24 = sbr.rel (%p22) target = $region8
    $region5: #{tpu_custom_call.1} parent=1 // loop_body
      %s26 = ssub.s32 %s21, 1
      %s27 = ssub.s32 %s21, 2
      %s28 = sadd.s32 %s21, 1
      %s29 = ssub.s32 %s21, %s28
      %p30 = scmp.eq.s32.totalorder %s29, 0
      %s32 = sadd.s32 %s31, 1
      %s33 = scalar_select %p30, %s31, %s32
      %p36 = pneg %p30
      %p37 = scmp.eq.s32.totalorder %s21, 5
      %p38 = por %p36, %p37
      %p39 = scmp.ne.s32.totalorder %s31, %s34
      %p40 = scmp.eq.s32.totalorder %s21, 0
      %p41 = por %p39, %p40
      %p42 = scmp.ne.s32.totalorder %s31, %s34
      %p43 = scmp.eq.s32.totalorder %s26, 5
      %p44 = por %p42, %p43
      %p45 = scmp.ne.s32.totalorder %s34, %s35
      %p46 = scmp.eq.s32.totalorder %s26, 0
      %p47 = por %p45, %p46
      %p48 = scmp.ne.s32.totalorder %s34, %s35
      %p49 = scmp.eq.s32.totalorder %s27, 5
      %p50 = por %p48, %p49
      %p52 = scmp.ne.s32.totalorder %s35, %s51
      %p53 = scmp.eq.s32.totalorder %s27, 0
      %p54 = por %p52, %p53
      %s56 = sadd.s32 %s55, 1
      %p59 = scmp.eq.s32.totalorder %s21, 5
      %p60 = scmp.ne.s32.totalorder %s55, %s57
      %p61 = scmp.eq.s32.totalorder %s21, 0
      %p62 = por %p60, %p61
      %p63 = scmp.ne.s32.totalorder %s55, %s57
      %p64 = scmp.eq.s32.totalorder %s26, 5
      %p65 = por %p63, %p64
      %p66 = scmp.ne.s32.totalorder %s57, %s58
      %p67 = scmp.eq.s32.totalorder %s26, 0
      %p68 = por %p66, %p67
      %p69 = scmp.ne.s32.totalorder %s57, %s58
      %p70 = scmp.eq.s32.totalorder %s27, 5
      %p71 = por %p69, %p70
      %p73 = scmp.ne.s32.totalorder %s58, %s72
      %p74 = scmp.eq.s32.totalorder %s27, 0
      %p75 = por %p73, %p74
      %s76 = ssub.s32 %s21, %s28
      %p77 = scmp.eq.s32.totalorder %s76, 0
      %s79 = sadd.s32 %s78, 1
      %s80 = scalar_select %p77, %s78, %s79
      %p83 = pneg %p77
      %p84 = scmp.eq.s32.totalorder %s21, 5
      %p85 = por %p83, %p84
      %p86 = scmp.ne.s32.totalorder %s78, %s81
      %p87 = scmp.eq.s32.totalorder %s21, 0
      %p88 = por %p86, %p87
      %p89 = scmp.ne.s32.totalorder %s78, %s81
      %p90 = scmp.eq.s32.totalorder %s26, 5
      %p91 = por %p89, %p90
      %p92 = scmp.ne.s32.totalorder %s81, %s82
      %p93 = scmp.eq.s32.totalorder %s26, 0
      %p94 = por %p92, %p93
      %p95 = scmp.ne.s32.totalorder %s81, %s82
      %p96 = scmp.eq.s32.totalorder %s27, 5
      %p97 = por %p95, %p96
      %p99 = scmp.ne.s32.totalorder %s82, %s98
      %p100 = scmp.eq.s32.totalorder %s27, 0
      %p101 = por %p99, %p100
      %s103 = sadd.s32 %s102, 1
      %p106 = scmp.eq.s32.totalorder %s21, 5
      %p107 = scmp.ne.s32.totalorder %s102, %s104
      %p108 = scmp.eq.s32.totalorder %s21, 0
      %p109 = por %p107, %p108
      %p110 = scmp.ne.s32.totalorder %s102, %s104
      %p111 = scmp.eq.s32.totalorder %s26, 5
      %p112 = por %p110, %p111
      %p113 = scmp.ne.s32.totalorder %s104, %s105
      %p114 = scmp.eq.s32.totalorder %s26, 0
      %p115 = por %p113, %p114
      %p116 = scmp.ne.s32.totalorder %s104, %s105
      %p117 = scmp.eq.s32.totalorder %s27, 5
      %p118 = por %p116, %p117
      %p120 = scmp.ne.s32.totalorder %s105, %s119
      %p121 = scmp.eq.s32.totalorder %s27, 0
      %p122 = por %p120, %p121
      %s123 = ssub.s32 %s21, %s28
      %p124 = scmp.eq.s32.totalorder %s123, 0
      %s126 = sadd.s32 %s125, 1
      %s127 = scalar_select %p124, %s125, %s126
      %p130 = pneg %p124
      %p131 = scmp.eq.s32.totalorder %s21, 5
      %p132 = por %p130, %p131
      %p133 = scmp.ne.s32.totalorder %s125, %s128
      %p134 = scmp.eq.s32.totalorder %s21, 0
      %p135 = por %p133, %p134
      %p136 = scmp.ne.s32.totalorder %s125, %s128
      %p137 = scmp.eq.s32.totalorder %s26, 5
      %p138 = por %p136, %p137
      %p139 = scmp.ne.s32.totalorder %s128, %s129
      %p140 = scmp.eq.s32.totalorder %s26, 0
      %p141 = por %p139, %p140
      %p142 = scmp.ne.s32.totalorder %s128, %s129
      %p143 = scmp.eq.s32.totalorder %s27, 5
      %p144 = por %p142, %p143
      %p146 = scmp.ne.s32.totalorder %s129, %s145
      %p147 = scmp.eq.s32.totalorder %s27, 0
      %p148 = por %p146, %p147
      %s149 = ssub.s32 %s21, %s28
      %p150 = scmp.eq.s32.totalorder %s149, 0
      %s152 = sadd.s32 %s151, 1
      %s153 = scalar_select %p150, %s151, %s152
      %p156 = pneg %p150
      %p157 = scmp.eq.s32.totalorder %s21, 5
      %p158 = por %p156, %p157
      %p159 = scmp.ne.s32.totalorder %s151, %s154
      %p160 = scmp.eq.s32.totalorder %s21, 0
      %p161 = por %p159, %p160
      %p162 = scmp.ne.s32.totalorder %s151, %s154
      %p163 = scmp.eq.s32.totalorder %s26, 5
      %p164 = por %p162, %p163
      %p165 = scmp.ne.s32.totalorder %s154, %s155
      %p166 = scmp.eq.s32.totalorder %s26, 0
      %p167 = por %p165, %p166
      %p168 = scmp.ne.s32.totalorder %s154, %s155
      %p169 = scmp.eq.s32.totalorder %s27, 5
      %p170 = por %p168, %p169
      %p172 = scmp.ne.s32.totalorder %s155, %s171
      %p173 = scmp.eq.s32.totalorder %s27, 0
      %p174 = por %p172, %p173
      %s176 = sadd.s32 %s175, 1
      %p179 = scmp.eq.s32.totalorder %s21, 5
      %p180 = scmp.ne.s32.totalorder %s175, %s177
      %p181 = scmp.eq.s32.totalorder %s21, 0
      %p182 = por %p180, %p181
      %p183 = scmp.ne.s32.totalorder %s175, %s177
      %p184 = scmp.eq.s32.totalorder %s26, 5
      %p185 = por %p183, %p184
      %p186 = scmp.ne.s32.totalorder %s177, %s178
      %p187 = scmp.eq.s32.totalorder %s26, 0
      %p188 = por %p186, %p187
      %p189 = scmp.ne.s32.totalorder %s177, %s178
      %p190 = scmp.eq.s32.totalorder %s27, 5
      %p191 = por %p189, %p190
      %p193 = scmp.ne.s32.totalorder %s178, %s192
      %p194 = scmp.eq.s32.totalorder %s27, 0
      %p195 = por %p193, %p194
      %s197 = sadd.s32 %s196, 1
      %p200 = scmp.eq.s32.totalorder %s21, 5
      %p201 = scmp.ne.s32.totalorder %s196, %s198
      %p202 = scmp.eq.s32.totalorder %s21, 0
      %p203 = por %p201, %p202
      %p204 = scmp.ne.s32.totalorder %s196, %s198
      %p205 = scmp.eq.s32.totalorder %s26, 5
      %p206 = por %p204, %p205
      %p207 = scmp.ne.s32.totalorder %s198, %s199
      %p208 = scmp.eq.s32.totalorder %s26, 0
      %p209 = por %p207, %p208
      %p210 = scmp.ne.s32.totalorder %s198, %s199
      %p211 = scmp.eq.s32.totalorder %s27, 5
      %p212 = por %p210, %p211
      %p214 = scmp.ne.s32.totalorder %s199, %s213
      %p215 = scmp.eq.s32.totalorder %s27, 0
      %p216 = por %p214, %p215
      %s217 = ssub.s32 %s21, %s28
      %p218 = scmp.eq.s32.totalorder %s217, 0
      %s220 = sadd.s32 %s219, 1
      %s221 = scalar_select %p218, %s219, %s220
      %p224 = pneg %p218
      %p225 = scmp.eq.s32.totalorder %s21, 5
      %p226 = por %p224, %p225
      %p227 = scmp.ne.s32.totalorder %s219, %s222
      %p228 = scmp.eq.s32.totalorder %s21, 0
      %p229 = por %p227, %p228
      %p230 = scmp.ne.s32.totalorder %s219, %s222
      %p231 = scmp.eq.s32.totalorder %s26, 5
      %p232 = por %p230, %p231
      %p233 = scmp.ne.s32.totalorder %s222, %s223
      %p234 = scmp.eq.s32.totalorder %s26, 0
      %p235 = por %p233, %p234
      %p236 = scmp.ne.s32.totalorder %s222, %s223
      %p237 = scmp.eq.s32.totalorder %s27, 5
      %p238 = por %p236, %p237
      %p240 = scmp.ne.s32.totalorder %s223, %s239
      %p241 = scmp.eq.s32.totalorder %s27, 0
      %p242 = por %p240, %p241
      %s243 = ssub.s32 %s21, %s28
      %p244 = scmp.eq.s32.totalorder %s243, 0
      %s246 = sadd.s32 %s245, 1
      %s247 = scalar_select %p244, %s245, %s246
      %p250 = pneg %p244
      %p251 = scmp.eq.s32.totalorder %s21, 5
      %p252 = por %p250, %p251
      %p253 = scmp.ne.s32.totalorder %s245, %s248
      %p254 = scmp.eq.s32.totalorder %s21, 0
      %p255 = por %p253, %p254
      %p256 = scmp.ne.s32.totalorder %s245, %s248
      %p257 = scmp.eq.s32.totalorder %s26, 5
      %p258 = por %p256, %p257
      %p259 = scmp.ne.s32.totalorder %s248, %s249
      %p260 = scmp.eq.s32.totalorder %s26, 0
      %p261 = por %p259, %p260
      %p262 = scmp.ne.s32.totalorder %s248, %s249
      %p263 = scmp.eq.s32.totalorder %s27, 5
      %p264 = por %p262, %p263
      %p266 = scmp.ne.s32.totalorder %s249, %s265
      %p267 = scmp.eq.s32.totalorder %s27, 0
      %p268 = por %p266, %p267
      %p269 = scmp.le.s32.totalorder 1, %s21
      %p270 = scmp.lt.s32.totalorder %s21, 7
      %p271 = pnand %p269, %p270
      %p272 = pneg %p271
      // Predicated region
      $region9: #{tpu_custom_call.1} parent=5 // pred_check
        _
      $region10: #{tpu_custom_call.1} parent=5 // pred_check_branch
        %274 = sbr.rel (%p271) target = $region12
      $region11: #{tpu_custom_call.1} parent=5 // pred_region
        %s275 = ssub.s32 %s21, 1
        // Predicated region
        $region13: #{tpu_custom_call.1} parent=11 // pred_check
          %p276 = pneg %p68
        $region14: #{tpu_custom_call.1} parent=11 // pred_check_branch
          %278 = sbr.rel (%p276) target = $region16
        $region15: #{tpu_custom_call.1} parent=11 // pred_region
          _
        $region16: #{tpu_custom_call.1} parent=11 // pred_fallthru
          _
        // Predicated region
        $region17: #{tpu_custom_call.1} parent=11 // pred_check
          %p279 = pneg %p115
        $region18: #{tpu_custom_call.1} parent=11 // pred_check_branch
          %281 = sbr.rel (%p279) target = $region20
        $region19: #{tpu_custom_call.1} parent=11 // pred_region
          _
        $region20: #{tpu_custom_call.1} parent=11 // pred_fallthru
          _
        // Predicated region
        $region21: #{tpu_custom_call.1} parent=11 // pred_check
          %p282 = pneg %p188
        $region22: #{tpu_custom_call.1} parent=11 // pred_check_branch
          %284 = sbr.rel (%p282) target = $region24
        $region23: #{tpu_custom_call.1} parent=11 // pred_region
          _
        $region24: #{tpu_custom_call.1} parent=11 // pred_fallthru
          _
        // Predicated region
        $region25: #{tpu_custom_call.1} parent=11 // pred_check
          %p285 = pneg %p209
        $region26: #{tpu_custom_call.1} parent=11 // pred_check_branch
          %287 = sbr.rel (%p285) target = $region28
        $region27: #{tpu_custom_call.1} parent=11 // pred_region
          %s289 = ssub.s32 512, 512
          %290 = vsyncadd [#allocation5], %s289
          %s291 = sshll.u32 [#allocation6], 4
          %s292 = int_to_ptr.vmem [resolvable:$true] %s291
          %297 = dma.hbm_to_vmem [thread:$0]  %s7, 512, %s292, [#allocation5], 128, 128, 8
        $region28: #{tpu_custom_call.1} parent=11 // pred_fallthru
          _
      $region12: #{tpu_custom_call.1} parent=5 // pred_fallthru
        _
      %p298 = scmp.lt.s32.totalorder %s21, 6
      // Predicated region
      $region29: #{tpu_custom_call.1} parent=5 // pred_check
        %p299 = pneg %p298
      $region30: #{tpu_custom_call.1} parent=5 // pred_check_branch
        %301 = sbr.rel (%p299) target = $region32
      $region31: #{tpu_custom_call.1} parent=5 // pred_region
        // Predicated region
        $region33: #{tpu_custom_call.1} parent=31 // pred_check
          %p302 = pneg %p41
        $region34: #{tpu_custom_call.1} parent=31 // pred_check_branch
          %304 = sbr.rel (%p302) target = $region36
        $region35: #{tpu_custom_call.1} parent=31 // pred_region
          %s305 = sand.u32 %s31, 1
          %s306 = scalar_lea.sflag [#allocation3], %s305
          %s307 = sand.u32 %s31, 1
          %s308 = smul.addr %s307, 56
          %s309 = scalar_lea.vmem [#allocation2], %s308
          %s311 = ssub.s32 896, 896
          %312 = vsyncadd %s306, %s311
          %s313 = smul.addr %s21, 7
          %s314 = smul.addr %s313, 128
          %s315 = scalar_lea.hbm %s0, %s314
          %s316 = sshll.u32 %s309, 4
          %s317 = int_to_ptr.vmem [resolvable:$true] %s316
          %322 = dma.hbm_to_vmem [thread:$0]  %s315, 896, %s317, %s306, 128, 128, 8
        $region36: #{tpu_custom_call.1} parent=31 // pred_fallthru
          _
        // Predicated region
        $region37: #{tpu_custom_call.1} parent=31 // pred_check
          %p323 = pneg %p88
        $region38: #{tpu_custom_call.1} parent=31 // pred_check_branch
          %325 = sbr.rel (%p323) target = $region40
        $region39: #{tpu_custom_call.1} parent=31 // pred_region
          %p326 = scmp.lt.s32.totalorder %s21, 5
          %s327 = scalar_select %p326, %s21, 5
          %s328 = smul.addr %s327, 16
          %s329 = smul.addr %s328, 4
          %s330 = scalar_lea.vmem %s2, %s329
        $region40: #{tpu_custom_call.1} parent=31 // pred_fallthru
          _
        // Predicated region
        $region41: #{tpu_custom_call.1} parent=31 // pred_check
          %p331 = pneg %p135
        $region42: #{tpu_custom_call.1} parent=31 // pred_check_branch
          %333 = sbr.rel (%p331) target = $region44
        $region43: #{tpu_custom_call.1} parent=31 // pred_region
          %s334 = sand.u32 %s21, 1
          %s335 = scalar_lea.sflag [#allocation5], %s334
          %s336 = sand.u32 %s125, 1
          %s337 = smul.addr %s336, 40
          %s338 = scalar_lea.vmem [#allocation4], %s337
          %s340 = ssub.s32 640, 640
          %341 = vsyncadd %s335, %s340
          %s342 = smul.addr %s21, 5
          %s343 = smul.addr %s342, 128
          %s344 = scalar_lea.hbm %s4, %s343
          %s345 = sshll.u32 %s338, 4
          %s346 = int_to_ptr.vmem [resolvable:$true] %s345
          %351 = dma.hbm_to_vmem [thread:$0]  %s344, 640, %s346, %s335, 128, 128, 8
        $region44: #{tpu_custom_call.1} parent=31 // pred_fallthru
          _
        // Predicated region
        $region45: #{tpu_custom_call.1} parent=31 // pred_check
          %p352 = pneg %p161
        $region46: #{tpu_custom_call.1} parent=31 // pred_check_branch
          %354 = sbr.rel (%p352) target = $region48
        $region47: #{tpu_custom_call.1} parent=31 // pred_region
          %p355 = scmp.lt.s32.totalorder %s21, 5
          %s356 = scalar_select %p355, %s21, 5
          %s357 = smul.addr %s356, 16
          %s358 = smul.addr %s357, 4
          %s359 = scalar_lea.vmem %s5, %s358
        $region48: #{tpu_custom_call.1} parent=31 // pred_fallthru
          _
        // Predicated region
        $region49: #{tpu_custom_call.1} parent=31 // pred_check
          %p360 = pneg %p229
        $region50: #{tpu_custom_call.1} parent=31 // pred_check_branch
          %362 = sbr.rel (%p360) target = $region52
        $region51: #{tpu_custom_call.1} parent=31 // pred_region
          %p363 = scmp.lt.s32.totalorder %s21, 5
          %s364 = scalar_select %p363, %s21, 5
          %s365 = smul.addr %s364, 16
          %s366 = smul.addr %s365, 8
          %s367 = scalar_lea.vmem %s8, %s366
        $region52: #{tpu_custom_call.1} parent=31 // pred_fallthru
          _
      $region32: #{tpu_custom_call.1} parent=5 // pred_fallthru
        _
      %p368 = scmp.le.s32.totalorder 1, %s21
      %p369 = scmp.lt.s32.totalorder %s21, 7
      %p370 = pnand %p368, %p369
      %p371 = pneg %p370
      // Predicated region
      $region53: #{tpu_custom_call.1} parent=5 // pred_check
        _
      $region54: #{tpu_custom_call.1} parent=5 // pred_check_branch
        %373 = sbr.rel (%p370) target = $region56
      $region55: #{tpu_custom_call.1} parent=5 // pred_region
        %s374 = ssub.s32 %s21, 1
        %s375 = sand.u32 %s34, 1
        %s376 = scalar_lea.sflag [#allocation3], %s375
        %s377 = sand.u32 %s34, 1
        %s378 = smul.addr %s377, 56
        %s379 = scalar_lea.vmem [#allocation2], %s378
        // Predicated region
        $region57: #{tpu_custom_call.1} parent=55 // pred_check
          %p380 = pneg %p47
        $region58: #{tpu_custom_call.1} parent=55 // pred_check_branch
          %382 = sbr.rel (%p380) target = $region60
        $region59: #{tpu_custom_call.1} parent=55 // pred_region
          %383 = dma.done %s376, 896
        $region60: #{tpu_custom_call.1} parent=55 // pred_fallthru
          _
        %s384 = sand.u32 %s26, 1
        %s385 = scalar_lea.sflag [#allocation5], %s384
        %s386 = sand.u32 %s128, 1
        %s387 = smul.addr %s386, 40
        %s388 = scalar_lea.vmem [#allocation4], %s387
        // Predicated region
        $region61: #{tpu_custom_call.1} parent=55 // pred_check
          %p389 = pneg %p141
        $region62: #{tpu_custom_call.1} parent=55 // pred_check_branch
          %391 = sbr.rel (%p389) target = $region64
        $region63: #{tpu_custom_call.1} parent=55 // pred_region
          %392 = dma.done %s385, 640
        $region64: #{tpu_custom_call.1} parent=55 // pred_fallthru
          _
        // Predicated region
        $region65: #{tpu_custom_call.1} parent=55 // pred_check
          %p393 = pneg %p209
        $region66: #{tpu_custom_call.1} parent=55 // pred_check_branch
          %395 = sbr.rel (%p393) target = $region68
        $region67: #{tpu_custom_call.1} parent=55 // pred_region
          %396 = dma.done [#allocation5], 512
        $region68: #{tpu_custom_call.1} parent=55 // pred_fallthru
          _
        %s397 = sand.u32 %s34, 1
        %s398 = scalar_lea.sflag [#allocation3], %s397
        %s399 = sand.u32 %s34, 1
        %s400 = smul.addr %s399, 56
        %s401 = scalar_lea.vmem [#allocation2], %s400
        %p402 = pneg %p47
        %p403 = pneg %p44
        %p404 = pneg %p68
        %p405 = pneg %p65
        %p406 = scmp.lt.s32.totalorder %s26, 5
        %s407 = scalar_select %p406, %s26, 5
        %s408 = smul.addr %s407, 16
        %s409 = smul.addr %s408, 4
        %s410 = scalar_lea.vmem %s2, %s409
        %p411 = pneg %p94
        %p412 = pneg %p91
        %p413 = pneg %p115
        %p414 = pneg %p112
        %s415 = sand.u32 %s26, 1
        %s416 = scalar_lea.sflag [#allocation5], %s415
        %s417 = sand.u32 %s128, 1
        %s418 = smul.addr %s417, 40
        %s419 = scalar_lea.vmem [#allocation4], %s418
        %p420 = pneg %p141
        %p421 = pneg %p138
        %p422 = scmp.lt.s32.totalorder %s26, 5
        %s423 = scalar_select %p422, %s26, 5
        %s424 = smul.addr %s423, 16
        %s425 = smul.addr %s424, 4
        %s426 = scalar_lea.vmem %s5, %s425
        %p427 = pneg %p167
        %p428 = pneg %p164
        %p429 = pneg %p188
        %p430 = pneg %p185
        %p431 = pneg %p209
        %p432 = pneg %p206
        %p433 = scmp.lt.s32.totalorder %s26, 5
        %s434 = scalar_select %p433, %s26, 5
        %s435 = smul.addr %s434, 16
        %s436 = smul.addr %s435, 8
        %s437 = scalar_lea.vmem %s8, %s436
        %p438 = pneg %p235
        %p439 = pneg %p232
        %p440 = pneg %p261
        %p441 = pneg %p258
        %p442 = scmp.lt.s32.totalorder %s26, 5
        %s443 = scalar_select %p442, %s26, 5
        %s444 = smul.addr %s443, 4
        %s445 = smul.addr %s444, 8
        %s446 = scalar_lea.vmem %s9, %s445
        %p447 = scmp.lt.s32.totalorder %s26, 5
        %s448 = scalar_select %p447, %s26, 5
        %s449 = smul.addr %s448, 16
        %s450 = smul.addr %s449, 4
        %s451 = scalar_lea.vmem %s2, %s450
        %p452 = scmp.lt.s32.totalorder %s26, 5
        %s453 = scalar_select %p452, %s26, 5
        %s454 = smul.addr %s453, 16
        %s455 = smul.addr %s454, 4
        %s456 = scalar_lea.vmem %s5, %s455
        %p457 = scmp.lt.s32.totalorder %s26, 5
        %s458 = scalar_select %p457, %s26, 5
        %s459 = smul.addr %s458, 16
        %s460 = smul.addr %s459, 8
        %s461 = scalar_lea.vmem %s8, %s460
        %p462 = scmp.lt.s32.totalorder %s26, 5
        %s463 = scalar_select %p462, %s26, 5
        %s464 = smul.addr %s463, 4
        %s465 = smul.addr %s464, 8
        %s466 = scalar_lea.vmem %s9, %s465
        %v468 = vld [vmem:[%s1] sm:$0xff]
        %v469 = vld [vmem:[%s1 + $0x8] sm:$0xff]
        %v470 = vld [vmem:[%s1 + $0x10] sm:$0xff]
        %v471 = vld [vmem:[%s1 + $0x18] sm:$0xff]
        %v472 = vld [vmem:[%s379] sm:$0xff]
        %v473 = vld [vmem:[%s379 + $0x8] sm:$0xff]
        %v474 = vld [vmem:[%s379 + $0x10] sm:$0xff]
        %v475 = vld [vmem:[%s379 + $0x18] sm:$0xff]
        %v476 = vld [vmem:[%s379 + $0x20] sm:$0xff]
        %v477 = vld [vmem:[%s379 + $0x28] sm:$0xff]
        %v478 = vld [vmem:[%s379 + $0x30] sm:$0x3]
        %vm479 = vcmask 408576
        %v481 = vsel %vm479, %v468, 0
        %v484 = vsel %vm479, %v469, 0
        %v487 = vsel %vm479, %v470, 0
        %v490 = vsel %vm479, %v471, 0
        %vm492 = vcmask 1041408
        %v494 = vsel %vm492, %v478, 0
        %496 = vmatprep.subr.mxu0 0.0
        %497 = vmatpush1.msra.mxu0 %v472
        %498 = vmatprep.subr.mxu0 0.0
        %499 = vmatpush1.msra.mxu0 %v473
        %500 = vmatprep.subr.mxu0 0.0
        %501 = vmatpush1.msra.mxu0 %v474
        %502 = vmatprep.subr.mxu0 0.0
        %503 = vmatpush1.msra.mxu0 %v475
        %504 = vmatprep.subr.mxu0 0.0
        %505 = vmatpush1.msra.mxu0 %v476
        %506 = vmatprep.subr.mxu0 0.0
        %507 = vmatpush1.msra.mxu0 %v477
        %508 = vmatprep.subr.mxu0 0.0
        %509 = vmatpush1.msra.mxu0 %v494
        %510 = vmatprep.subr.mxu0 0.0
        %511 = vmatpush1.msra.mxu0 0.0
        %512 = vmatprep.subr.mxu0 0.0
        %513 = vmatpush1.msra.mxu0 0.0
        %514 = vmatprep.subr.mxu0 0.0
        %515 = vmatpush1.msra.mxu0 0.0
        %516 = vmatprep.subr.mxu0 0.0
        %517 = vmatpush1.msra.mxu0 0.0
        %518 = vmatprep.subr.mxu0 0.0
        %519 = vmatpush1.msra.mxu0 0.0
        %520 = vmatprep.subr.mxu0 0.0
        %521 = vmatpush1.msra.mxu0 0.0
        %522 = vmatprep.subr.mxu0 0.0
        %523 = vmatpush1.msra.mxu0 0.0
        %524 = vmatprep.subr.mxu0 0.0
        %525 = vmatpush1.msra.mxu0 0.0
        %526 = vmatprep.subr.mxu0 0.0
        %527 = vmatpush1.msra.mxu0 0.0
        %528 = vmatprep.subr.mxu0 0.0
        %529 = vmatpush1.msra.mxu0 0.0
        %530 = vmatprep.subr.mxu0 0.0
        %531 = vmatpush1.msra.mxu0 0.0
        %532 = vmatprep.subr.mxu0 0.0
        %533 = vmatpush1.msra.mxu0 0.0
        %534 = vmatprep.subr.mxu0 0.0
        %535 = vmatpush1.msra.mxu0 0.0
        %536 = vmatprep.subr.mxu0 0.0
        %537 = vmatpush1.msra.mxu0 0.0
        %538 = vmatprep.subr.mxu0 0.0
        %539 = vmatpush1.msra.mxu0 0.0
        %540 = vmatprep.subr.mxu0 0.0
        %541 = vmatpush1.msra.mxu0 0.0
        %542 = vmatprep.subr.mxu0 0.0
        %543 = vmatpush1.msra.mxu0 0.0
        %544 = vmatprep.subr.mxu0 0.0
        %545 = vmatpush1.msra.mxu0 0.0
        %546 = vmatprep.subr.mxu0 0.0
        %547 = vmatpush1.msra.mxu0 0.0
        %548 = vmatprep.subr.mxu0 0.0
        %549 = vmatpush1.msra.mxu0 0.0
        %550 = vmatprep.subr.mxu0 0.0
        %551 = vmatpush1.msra.mxu0 0.0
        %552 = vmatprep.subr.mxu0 0.0
        %553 = vmatpush1.msra.mxu0 0.0
        %554 = vmatprep.subr.mxu0 0.0
        %555 = vmatpush1.msra.mxu0 0.0
        %556 = vmatprep.subr.mxu0 0.0
        %557 = vmatpush1.msra.mxu0 0.0
        %558 = vmatprep.subr.mxu0 0.0
        %559 = vmatpush1.msra.mxu0 0.0
        %560 = vmatprep.mubr.f32.mxu0 0.0
        %561 = vmatmul.mubr.f32.gmra.mrb[0].mxu0 %v481
        %v562 = vpop.f32.mrb[0].mxu0
        %v563 = vadd.f32 0.0, %v562
        %v564 = vpop.f32.mrb[0].mxu0
        %565 = vmatprep.mubr.f32.mxu0 0.0
        %566 = vmatmul.mubr.f32.gmra.mrb[0].mxu0 %v484
        %v567 = vpop.f32.mrb[0].mxu0
        %v568 = vadd.f32 0.0, %v567
        %v569 = vpop.f32.mrb[0].mxu0
        %570 = vmatprep.mubr.f32.mxu0 0.0
        %571 = vmatmul.mubr.f32.gmra.mrb[0].mxu0 %v487
        %v572 = vpop.f32.mrb[0].mxu0
        %v573 = vadd.f32 0.0, %v572
        %v574 = vpop.f32.mrb[0].mxu0
        %575 = vmatprep.mubr.f32.mxu0 0.0
        %576 = vmatmul.mubr.f32.gmra.mrb[0].mxu0 %v490
        %v577 = vpop.f32.mrb[0].mxu0
        %v578 = vadd.f32 0.0, %v577
        %v579 = vpop.f32.mrb[0].mxu0
        %580 = vdwg.mxu0
        %v581 = vmax.f32 %v563, 0.0
        %v582 = vmax.f32 %v568, 0.0
        %v583 = vmax.f32 %v573, 0.0
        %v584 = vmax.f32 %v578, 0.0
        %v585 = vld [vmem:[%s451] sm:$0xf]
        %v586 = vld [vmem:[%s451 + $0x4] sm:$0xf]
        %v587 = vld [vmem:[%s451 + $0x8] sm:$0xf]
        %v588 = vld [vmem:[%s451 + $0xc] sm:$0xf]
        %v589 = vld [vmem:[%s451 + $0x10] sm:$0xf]
        %v590 = vld [vmem:[%s451 + $0x14] sm:$0xf]
        %v591 = vld [vmem:[%s451 + $0x18] sm:$0xf]
        %v592 = vld [vmem:[%s451 + $0x1c] sm:$0xf]
        %v593 = vld [vmem:[%s451 + $0x20] sm:$0xf]
        %v594 = vld [vmem:[%s451 + $0x24] sm:$0xf]
        %v595 = vld [vmem:[%s451 + $0x28] sm:$0xf]
        %v596 = vld [vmem:[%s451 + $0x2c] sm:$0xf]
        %v597 = vld [vmem:[%s451 + $0x30] sm:$0xf]
        %v598 = vld [vmem:[%s451 + $0x34] sm:$0xf]
        %v599 = vld [vmem:[%s451 + $0x38] sm:$0xf]
        %v600 = vld [vmem:[%s451 + $0x3c] sm:$0xf]
        %v601 = vld [vmem:[%s3] sm:$0xff]
        %v602 = vld [vmem:[%s3 + $0x8] sm:$0xff]
        %v603 = vld [vmem:[%s3 + $0x10] sm:$0xff]
        %v604 = vld [vmem:[%s3 + $0x18] sm:$0xff]
        %v605 = vpack.c.bf16 %v582, %v581
        %v606 = vpack.c.bf16 %v584, %v583
        %v607 = vunpack.c.l.bf16 %v605
        %v608 = vunpack.c.h.bf16 %v605
        %v609 = vunpack.c.l.bf16 %v606
        %v610 = vunpack.c.h.bf16 %v606
        %v611 = vsub.f32 %v581, %v607
        %v612 = vsub.f32 %v582, %v608
        %v613 = vsub.f32 %v583, %v609
        %v614 = vsub.f32 %v584, %v610
        %v615 = vpack.c.bf16 %v612, %v611
        %v616 = vpack.c.bf16 %v614, %v613
        %v633 = vunpack.c.l.b16 %v585
        %v634 = vunpack.c.l.b16 %v586
        %v635 = vunpack.c.l.b16 %v587
        %v636 = vunpack.c.l.b16 %v588
        %v637 = vunpack.c.l.b16 %v589
        %v638 = vunpack.c.l.b16 %v590
        %v639 = vunpack.c.l.b16 %v591
        %v640 = vunpack.c.l.b16 %v592
        %v641 = vunpack.c.l.b16 %v593
        %v642 = vunpack.c.l.b16 %v594
        %v643 = vunpack.c.l.b16 %v595
        %v644 = vunpack.c.l.b16 %v596
        %v645 = vunpack.c.l.b16 %v597
        %v646 = vunpack.c.l.b16 %v598
        %v647 = vunpack.c.l.b16 %v599
        %v648 = vunpack.c.l.b16 %v600
        %v649 = vpack.c.b16 %v634, %v633
        %v650 = vpack.c.b16 %v636, %v635
        %v651 = vpack.c.b16 %v638, %v637
        %v652 = vpack.c.b16 %v640, %v639
        %v653 = vpack.c.b16 %v642, %v641
        %v654 = vpack.c.b16 %v644, %v643
        %v655 = vpack.c.b16 %v646, %v645
        %v656 = vpack.c.b16 %v648, %v647
        %665 = vmatprep.subr.bf16.mxu0 0
        %666 = vmatpush1.bf16.msra.mxu0 %v649
        %667 = vmatprep.subr.bf16.mxu0 0
        %668 = vmatpush1.bf16.msra.mxu0 %v650
        %669 = vmatprep.subr.bf16.mxu0 0
        %670 = vmatpush1.bf16.msra.mxu0 %v651
        %671 = vmatprep.subr.bf16.mxu0 0
        %672 = vmatpush1.bf16.msra.mxu0 %v652
        %673 = vmatprep.subr.bf16.mxu0 0
        %674 = vmatpush1.bf16.msra.mxu0 %v653
        %675 = vmatprep.subr.bf16.mxu0 0
        %676 = vmatpush1.bf16.msra.mxu0 %v654
        %677 = vmatprep.subr.bf16.mxu0 0
        %678 = vmatpush1.bf16.msra.mxu0 %v655
        %679 = vmatprep.subr.bf16.mxu0 0
        %680 = vmatpush1.bf16.msra.mxu0 %v656
        %681 = vmatprep.subr.bf16.mxu0 0
        %682 = vmatpush1.bf16.msra.mxu0 0
        %683 = vmatprep.subr.bf16.mxu0 0
        %684 = vmatpush1.bf16.msra.mxu0 0
        %685 = vmatprep.subr.bf16.mxu0 0
        %686 = vmatpush1.bf16.msra.mxu0 0
        %687 = vmatprep.subr.bf16.mxu0 0
        %688 = vmatpush1.bf16.msra.mxu0 0
        %689 = vmatprep.subr.bf16.mxu0 0
        %690 = vmatpush1.bf16.msra.mxu0 0
        %691 = vmatprep.subr.bf16.mxu0 0
        %692 = vmatpush1.bf16.msra.mxu0 0
        %693 = vmatprep.subr.bf16.mxu0 0
        %694 = vmatpush1.bf16.msra.mxu0 0
        %695 = vmatprep.subr.bf16.mxu0 0
        %696 = vmatpush1.bf16.msra.mxu0 0
        %697 = vmatprep.mubr.bf16.mxu0 0
        %698 = vmatmul.mubr.bf16.gmra.mrb[0].mxu0 %v615
        %v699 = vpop.f32.mrb[0].mxu0
        %v700 = vadd.f32 0.0, %v699
        %v701 = vpop.f32.mrb[0].mxu0
        %v702 = vpop.f32.mrb[0].mxu0
        %v703 = vadd.f32 0.0, %v702
        %v704 = vpop.f32.mrb[0].mxu0
        %705 = vmatprep.mubr.bf16.mxu0 0
        %706 = vmatmul.mubr.bf16.gmra.mrb[0].mxu0 %v616
        %v707 = vpop.f32.mrb[0].mxu0
        %v708 = vadd.f32 0.0, %v707
        %v709 = vpop.f32.mrb[0].mxu0
        %v710 = vpop.f32.mrb[0].mxu0
        %v711 = vadd.f32 0.0, %v710
        %v712 = vpop.f32.mrb[0].mxu0
        %713 = vdwg.mxu0
        %714 = vmatprep.subr.bf16.mxu0 0
        %715 = vmatpush1.bf16.msra.mxu0 %v649
        %716 = vmatprep.subr.bf16.mxu0 0
        %717 = vmatpush1.bf16.msra.mxu0 %v650
        %718 = vmatprep.subr.bf16.mxu0 0
        %719 = vmatpush1.bf16.msra.mxu0 %v651
        %720 = vmatprep.subr.bf16.mxu0 0
        %721 = vmatpush1.bf16.msra.mxu0 %v652
        %722 = vmatprep.subr.bf16.mxu0 0
        %723 = vmatpush1.bf16.msra.mxu0 %v653
        %724 = vmatprep.subr.bf16.mxu0 0
        %725 = vmatpush1.bf16.msra.mxu0 %v654
        %726 = vmatprep.subr.bf16.mxu0 0
        %727 = vmatpush1.bf16.msra.mxu0 %v655
        %728 = vmatprep.subr.bf16.mxu0 0
        %729 = vmatpush1.bf16.msra.mxu0 %v656
        %730 = vmatprep.subr.bf16.mxu0 0
        %731 = vmatpush1.bf16.msra.mxu0 0
        %732 = vmatprep.subr.bf16.mxu0 0
        %733 = vmatpush1.bf16.msra.mxu0 0
        %734 = vmatprep.subr.bf16.mxu0 0
        %735 = vmatpush1.bf16.msra.mxu0 0
        %736 = vmatprep.subr.bf16.mxu0 0
        %737 = vmatpush1.bf16.msra.mxu0 0
        %738 = vmatprep.subr.bf16.mxu0 0
        %739 = vmatpush1.bf16.msra.mxu0 0
        %740 = vmatprep.subr.bf16.mxu0 0
        %741 = vmatpush1.bf16.msra.mxu0 0
        %742 = vmatprep.subr.bf16.mxu0 0
        %743 = vmatpush1.bf16.msra.mxu0 0
        %744 = vmatprep.subr.bf16.mxu0 0
        %745 = vmatpush1.bf16.msra.mxu0 0
        %746 = vmatprep.mubr.bf16.mxu0 0
        %747 = vmatmul.mubr.bf16.gmra.mrb[0].mxu0 %v605
        %v748 = vpop.f32.mrb[0].mxu0
        %v749 = vadd.f32 %v700, %v748
        %v750 = vpop.f32.mrb[0].mxu0
        %v751 = vpop.f32.mrb[0].mxu0
        %v752 = vadd.f32 %v703, %v751
        %v753 = vpop.f32.mrb[0].mxu0
        %754 = vmatprep.mubr.bf16.mxu0 0
        %755 = vmatmul.mubr.bf16.gmra.mrb[0].mxu0 %v606
        %v756 = vpop.f32.mrb[0].mxu0
        %v757 = vadd.f32 %v708, %v756
        %v758 = vpop.f32.mrb[0].mxu0
        %v759 = vpop.f32.mrb[0].mxu0
        %v760 = vadd.f32 %v711, %v759
        %v761 = vpop.f32.mrb[0].mxu0
        %762 = vdwg.mxu0
        %vm763 = vcmask 261120
        %v765 = vsel %vm763, %v601, 0
        %v768 = vsel %vm763, %v602, 0
        %v771 = vsel %vm763, %v603, 0
        %v774 = vsel %vm763, %v604, 0
        %776 = vmatprep.subr.mxu0 0.0
        %777 = vmatpush1.msra.mxu0 %v749
        %778 = vmatprep.subr.mxu0 0.0
        %779 = vmatpush1.msra.mxu0 %v752
        %780 = vmatprep.subr.mxu0 0.0
        %781 = vmatpush1.msra.mxu0 %v757
        %782 = vmatprep.subr.mxu0 0.0
        %783 = vmatpush1.msra.mxu0 %v760
        %784 = vmatprep.subr.mxu0 0.0
        %785 = vmatpush1.msra.mxu0 0.0
        %786 = vmatprep.subr.mxu0 0.0
        %787 = vmatpush1.msra.mxu0 0.0
        %788 = vmatprep.subr.mxu0 0.0
        %789 = vmatpush1.msra.mxu0 0.0
        %790 = vmatprep.subr.mxu0 0.0
        %791 = vmatpush1.msra.mxu0 0.0
        %792 = vmatprep.subr.mxu0 0.0
        %793 = vmatpush1.msra.mxu0 0.0
        %794 = vmatprep.subr.mxu0 0.0
        %795 = vmatpush1.msra.mxu0 0.0
        %796 = vmatprep.subr.mxu0 0.0
        %797 = vmatpush1.msra.mxu0 0.0
        %798 = vmatprep.subr.mxu0 0.0
        %799 = vmatpush1.msra.mxu0 0.0
        %800 = vmatprep.subr.mxu0 0.0
        %801 = vmatpush1.msra.mxu0 0.0
        %802 = vmatprep.subr.mxu0 0.0
        %803 = vmatpush1.msra.mxu0 0.0
        %804 = vmatprep.subr.mxu0 0.0
        %805 = vmatpush1.msra.mxu0 0.0
        %806 = vmatprep.subr.mxu0 0.0
        %807 = vmatpush1.msra.mxu0 0.0
        %808 = vmatprep.subr.mxu0 0.0
        %809 = vmatpush1.msra.mxu0 0.0
        %810 = vmatprep.subr.mxu0 0.0
        %811 = vmatpush1.msra.mxu0 0.0
        %812 = vmatprep.subr.mxu0 0.0
        %813 = vmatpush1.msra.mxu0 0.0
        %814 = vmatprep.subr.mxu0 0.0
        %815 = vmatpush1.msra.mxu0 0.0
        %816 = vmatprep.subr.mxu0 0.0
        %817 = vmatpush1.msra.mxu0 0.0
        %818 = vmatprep.subr.mxu0 0.0
        %819 = vmatpush1.msra.mxu0 0.0
        %820 = vmatprep.subr.mxu0 0.0
        %821 = vmatpush1.msra.mxu0 0.0
        %822 = vmatprep.subr.mxu0 0.0
        %823 = vmatpush1.msra.mxu0 0.0
        %824 = vmatprep.subr.mxu0 0.0
        %825 = vmatpush1.msra.mxu0 0.0
        %826 = vmatprep.subr.mxu0 0.0
        %827 = vmatpush1.msra.mxu0 0.0
        %828 = vmatprep.subr.mxu0 0.0
        %829 = vmatpush1.msra.mxu0 0.0
        %830 = vmatprep.subr.mxu0 0.0
        %831 = vmatpush1.msra.mxu0 0.0
        %832 = vmatprep.subr.mxu0 0.0
        %833 = vmatpush1.msra.mxu0 0.0
        %834 = vmatprep.subr.mxu0 0.0
        %835 = vmatpush1.msra.mxu0 0.0
        %836 = vmatprep.subr.mxu0 0.0
        %837 = vmatpush1.msra.mxu0 0.0
        %838 = vmatprep.subr.mxu0 0.0
        %839 = vmatpush1.msra.mxu0 0.0
        %840 = vmatprep.mubr.f32.mxu0 0.0
        %841 = vmatmul.mubr.f32.gmra.mrb[0].mxu0 %v765
        %v842 = vpop.f32.mrb[0].mxu0
        %v843 = vadd.f32 0.0, %v842
        %v844 = vpop.f32.mrb[0].mxu0
        %845 = vmatprep.mubr.f32.mxu0 0.0
        %846 = vmatmul.mubr.f32.gmra.mrb[0].mxu0 %v768
        %v847 = vpop.f32.mrb[0].mxu0
        %v848 = vadd.f32 0.0, %v847
        %v849 = vpop.f32.mrb[0].mxu0
        %850 = vmatprep.mubr.f32.mxu0 0.0
        %851 = vmatmul.mubr.f32.gmra.mrb[0].mxu0 %v771
        %v852 = vpop.f32.mrb[0].mxu0
        %v853 = vadd.f32 0.0, %v852
        %v854 = vpop.f32.mrb[0].mxu0
        %855 = vmatprep.mubr.f32.mxu0 0.0
        %856 = vmatmul.mubr.f32.gmra.mrb[0].mxu0 %v774
        %v857 = vpop.f32.mrb[0].mxu0
        %v858 = vadd.f32 0.0, %v857
        %v859 = vpop.f32.mrb[0].mxu0
        %860 = vdwg.mxu0
        %v861 = vadd.f32 %v563, %v843
        %v862 = vadd.f32 %v568, %v848
        %v863 = vadd.f32 %v573, %v853
        %v864 = vadd.f32 %v578, %v858
        %v865 = vmax.f32 %v861, 0.0
        %v866 = vmax.f32 %v862, 0.0
        %v867 = vmax.f32 %v863, 0.0
        %v868 = vmax.f32 %v864, 0.0
        %v869 = vpack.c.bf16 %v866, %v865
        %v870 = vpack.c.bf16 %v868, %v867
        %v871 = vunpack.c.l.bf16 %v869
        %v872 = vunpack.c.h.bf16 %v869
        %v873 = vunpack.c.l.bf16 %v870
        %v874 = vunpack.c.h.bf16 %v870
        %v875 = vsub.f32 %v865, %v871
        %v876 = vsub.f32 %v866, %v872
        %v877 = vsub.f32 %v867, %v873
        %v878 = vsub.f32 %v868, %v874
        %v879 = vpack.c.bf16 %v876, %v875
        %v880 = vpack.c.bf16 %v878, %v877
        %881 = vmatprep.subr.bf16.mxu0 0
        %882 = vmatpush1.bf16.msra.mxu0 %v649
        %883 = vmatprep.subr.bf16.mxu0 0
        %884 = vmatpush1.bf16.msra.mxu0 %v650
        %885 = vmatprep.subr.bf16.mxu0 0
        %886 = vmatpush1.bf16.msra.mxu0 %v651
        %887 = vmatprep.subr.bf16.mxu0 0
        %888 = vmatpush1.bf16.msra.mxu0 %v652
        %889 = vmatprep.subr.bf16.mxu0 0
        %890 = vmatpush1.bf16.msra.mxu0 %v653
        %891 = vmatprep.subr.bf16.mxu0 0
        %892 = vmatpush1.bf16.msra.mxu0 %v654
        %893 = vmatprep.subr.bf16.mxu0 0
        %894 = vmatpush1.bf16.msra.mxu0 %v655
        %895 = vmatprep.subr.bf16.mxu0 0
        %896 = vmatpush1.bf16.msra.mxu0 %v656
        %897 = vmatprep.subr.bf16.mxu0 0
        %898 = vmatpush1.bf16.msra.mxu0 0
        %899 = vmatprep.subr.bf16.mxu0 0
        %900 = vmatpush1.bf16.msra.mxu0 0
        %901 = vmatprep.subr.bf16.mxu0 0
        %902 = vmatpush1.bf16.msra.mxu0 0
        %903 = vmatprep.subr.bf16.mxu0 0
        %904 = vmatpush1.bf16.msra.mxu0 0
        %905 = vmatprep.subr.bf16.mxu0 0
        %906 = vmatpush1.bf16.msra.mxu0 0
        %907 = vmatprep.subr.bf16.mxu0 0
        %908 = vmatpush1.bf16.msra.mxu0 0
        %909 = vmatprep.subr.bf16.mxu0 0
        %910 = vmatpush1.bf16.msra.mxu0 0
        %911 = vmatprep.subr.bf16.mxu0 0
        %912 = vmatpush1.bf16.msra.mxu0 0
        %913 = vmatprep.mubr.bf16.mxu0 0
        %914 = vmatmul.mubr.bf16.gmra.mrb[0].mxu0 %v879
        %v915 = vpop.f32.mrb[0].mxu0
        %v916 = vadd.f32 0.0, %v915
        %v917 = vpop.f32.mrb[0].mxu0
        %v918 = vpop.f32.mrb[0].mxu0
        %v919 = vadd.f32 0.0, %v918
        %v920 = vpop.f32.mrb[0].mxu0
        %921 = vmatprep.mubr.bf16.mxu0 0
        %922 = vmatmul.mubr.bf16.gmra.mrb[0].mxu0 %v880
        %v923 = vpop.f32.mrb[0].mxu0
        %v924 = vadd.f32 0.0, %v923
        %v925 = vpop.f32.mrb[0].mxu0
        %v926 = vpop.f32.mrb[0].mxu0
        %v927 = vadd.f32 0.0, %v926
        %v928 = vpop.f32.mrb[0].mxu0
        %929 = vdwg.mxu0
        %930 = vmatprep.subr.bf16.mxu0 0
        %931 = vmatpush1.bf16.msra.mxu0 %v649
        %932 = vmatprep.subr.bf16.mxu0 0
        %933 = vmatpush1.bf16.msra.mxu0 %v650
        %934 = vmatprep.subr.bf16.mxu0 0
        %935 = vmatpush1.bf16.msra.mxu0 %v651
        %936 = vmatprep.subr.bf16.mxu0 0
        %937 = vmatpush1.bf16.msra.mxu0 %v652
        %938 = vmatprep.subr.bf16.mxu0 0
        %939 = vmatpush1.bf16.msra.mxu0 %v653
        %940 = vmatprep.subr.bf16.mxu0 0
        %941 = vmatpush1.bf16.msra.mxu0 %v654
        %942 = vmatprep.subr.bf16.mxu0 0
        %943 = vmatpush1.bf16.msra.mxu0 %v655
        %944 = vmatprep.subr.bf16.mxu0 0
        %945 = vmatpush1.bf16.msra.mxu0 %v656
        %946 = vmatprep.subr.bf16.mxu0 0
        %947 = vmatpush1.bf16.msra.mxu0 0
        %948 = vmatprep.subr.bf16.mxu0 0
        %949 = vmatpush1.bf16.msra.mxu0 0
        %950 = vmatprep.subr.bf16.mxu0 0
        %951 = vmatpush1.bf16.msra.mxu0 0
        %952 = vmatprep.subr.bf16.mxu0 0
        %953 = vmatpush1.bf16.msra.mxu0 0
        %954 = vmatprep.subr.bf16.mxu0 0
        %955 = vmatpush1.bf16.msra.mxu0 0
        %956 = vmatprep.subr.bf16.mxu0 0
        %957 = vmatpush1.bf16.msra.mxu0 0
        %958 = vmatprep.subr.bf16.mxu0 0
        %959 = vmatpush1.bf16.msra.mxu0 0
        %960 = vmatprep.subr.bf16.mxu0 0
        %961 = vmatpush1.bf16.msra.mxu0 0
        %962 = vmatprep.mubr.bf16.mxu0 0
        %963 = vmatmul.mubr.bf16.gmra.mrb[0].mxu0 %v869
        %v964 = vpop.f32.mrb[0].mxu0
        %v965 = vadd.f32 %v916, %v964
        %v966 = vpop.f32.mrb[0].mxu0
        %v967 = vpop.f32.mrb[0].mxu0
        %v968 = vadd.f32 %v919, %v967
        %v969 = vpop.f32.mrb[0].mxu0
        %970 = vmatprep.mubr.bf16.mxu0 0
        %971 = vmatmul.mubr.bf16.gmra.mrb[0].mxu0 %v870
        %v972 = vpop.f32.mrb[0].mxu0
        %v973 = vadd.f32 %v924, %v972
        %v974 = vpop.f32.mrb[0].mxu0
        %v975 = vpop.f32.mrb[0].mxu0
        %v976 = vadd.f32 %v927, %v975
        %v977 = vpop.f32.mrb[0].mxu0
        %978 = vdwg.mxu0
        %979 = vmatprep.subr.mxu0 0.0
        %980 = vmatpush1.msra.mxu0 %v965
        %981 = vmatprep.subr.mxu0 0.0
        %982 = vmatpush1.msra.mxu0 %v968
        %983 = vmatprep.subr.mxu0 0.0
        %984 = vmatpush1.msra.mxu0 %v973
        %985 = vmatprep.subr.mxu0 0.0
        %986 = vmatpush1.msra.mxu0 %v976
        %987 = vmatprep.subr.mxu0 0.0
        %988 = vmatpush1.msra.mxu0 0.0
        %989 = vmatprep.subr.mxu0 0.0
        %990 = vmatpush1.msra.mxu0 0.0
        %991 = vmatprep.subr.mxu0 0.0
        %992 = vmatpush1.msra.mxu0 0.0
        %993 = vmatprep.subr.mxu0 0.0
        %994 = vmatpush1.msra.mxu0 0.0
        %995 = vmatprep.subr.mxu0 0.0
        %996 = vmatpush1.msra.mxu0 0.0
        %997 = vmatprep.subr.mxu0 0.0
        %998 = vmatpush1.msra.mxu0 0.0
        %999 = vmatprep.subr.mxu0 0.0
        %1000 = vmatpush1.msra.mxu0 0.0
        %1001 = vmatprep.subr.mxu0 0.0
        %1002 = vmatpush1.msra.mxu0 0.0
        %1003 = vmatprep.subr.mxu0 0.0
        %1004 = vmatpush1.msra.mxu0 0.0
        %1005 = vmatprep.subr.mxu0 0.0
        %1006 = vmatpush1.msra.mxu0 0.0
        %1007 = vmatprep.subr.mxu0 0.0
        %1008 = vmatpush1.msra.mxu0 0.0
        %1009 = vmatprep.subr.mxu0 0.0
        %1010 = vmatpush1.msra.mxu0 0.0
        %1011 = vmatprep.subr.mxu0 0.0
        %1012 = vmatpush1.msra.mxu0 0.0
        %1013 = vmatprep.subr.mxu0 0.0
        %1014 = vmatpush1.msra.mxu0 0.0
        %1015 = vmatprep.subr.mxu0 0.0
        %1016 = vmatpush1.msra.mxu0 0.0
        %1017 = vmatprep.subr.mxu0 0.0
        %1018 = vmatpush1.msra.mxu0 0.0
        %1019 = vmatprep.subr.mxu0 0.0
        %1020 = vmatpush1.msra.mxu0 0.0
        %1021 = vmatprep.subr.mxu0 0.0
        %1022 = vmatpush1.msra.mxu0 0.0
        %1023 = vmatprep.subr.mxu0 0.0
        %1024 = vmatpush1.msra.mxu0 0.0
        %1025 = vmatprep.subr.mxu0 0.0
        %1026 = vmatpush1.msra.mxu0 0.0
        %1027 = vmatprep.subr.mxu0 0.0
        %1028 = vmatpush1.msra.mxu0 0.0
        %1029 = vmatprep.subr.mxu0 0.0
        %1030 = vmatpush1.msra.mxu0 0.0
        %1031 = vmatprep.subr.mxu0 0.0
        %1032 = vmatpush1.msra.mxu0 0.0
        %1033 = vmatprep.subr.mxu0 0.0
        %1034 = vmatpush1.msra.mxu0 0.0
        %1035 = vmatprep.subr.mxu0 0.0
        %1036 = vmatpush1.msra.mxu0 0.0
        %1037 = vmatprep.subr.mxu0 0.0
        %1038 = vmatpush1.msra.mxu0 0.0
        %1039 = vmatprep.subr.mxu0 0.0
        %1040 = vmatpush1.msra.mxu0 0.0
        %1041 = vmatprep.subr.mxu0 0.0
        %1042 = vmatpush1.msra.mxu0 0.0
        %1043 = vmatprep.mubr.f32.mxu0 0.0
        %1044 = vmatmul.mubr.f32.gmra.mrb[0].mxu0 %v765
        %v1045 = vpop.f32.mrb[0].mxu0
        %v1046 = vadd.f32 0.0, %v1045
        %v1047 = vpop.f32.mrb[0].mxu0
        %1048 = vmatprep.mubr.f32.mxu0 0.0
        %1049 = vmatmul.mubr.f32.gmra.mrb[0].mxu0 %v768
        %v1050 = vpop.f32.mrb[0].mxu0
        %v1051 = vadd.f32 0.0, %v1050
        %v1052 = vpop.f32.mrb[0].mxu0
        %1053 = vmatprep.mubr.f32.mxu0 0.0
        %1054 = vmatmul.mubr.f32.gmra.mrb[0].mxu0 %v771
        %v1055 = vpop.f32.mrb[0].mxu0
        %v1056 = vadd.f32 0.0, %v1055
        %v1057 = vpop.f32.mrb[0].mxu0
        %1058 = vmatprep.mubr.f32.mxu0 0.0
        %1059 = vmatmul.mubr.f32.gmra.mrb[0].mxu0 %v774
        %v1060 = vpop.f32.mrb[0].mxu0
        %v1061 = vadd.f32 0.0, %v1060
        %v1062 = vpop.f32.mrb[0].mxu0
        %1063 = vdwg.mxu0
        %v1064 = vadd.f32 %v563, %v1046
        %v1065 = vadd.f32 %v568, %v1051
        %v1066 = vadd.f32 %v573, %v1056
        %v1067 = vadd.f32 %v578, %v1061
        %v1068 = vmax.f32 %v1064, 0.0
        %v1069 = vmax.f32 %v1065, 0.0
        %v1070 = vmax.f32 %v1066, 0.0
        %v1071 = vmax.f32 %v1067, 0.0
        %v1072 = vld [vmem:[%s456] sm:$0xf]
        %v1073 = vld [vmem:[%s456 + $0x4] sm:$0xf]
        %v1074 = vld [vmem:[%s456 + $0x8] sm:$0xf]
        %v1075 = vld [vmem:[%s456 + $0xc] sm:$0xf]
        %v1076 = vld [vmem:[%s456 + $0x10] sm:$0xf]
        %v1077 = vld [vmem:[%s456 + $0x14] sm:$0xf]
        %v1078 = vld [vmem:[%s456 + $0x18] sm:$0xf]
        %v1079 = vld [vmem:[%s456 + $0x1c] sm:$0xf]
        %v1080 = vld [vmem:[%s456 + $0x20] sm:$0xf]
        %v1081 = vld [vmem:[%s456 + $0x24] sm:$0xf]
        %v1082 = vld [vmem:[%s456 + $0x28] sm:$0xf]
        %v1083 = vld [vmem:[%s456 + $0x2c] sm:$0xf]
        %v1084 = vld [vmem:[%s456 + $0x30] sm:$0xf]
        %v1085 = vld [vmem:[%s456 + $0x34] sm:$0xf]
        %v1086 = vld [vmem:[%s456 + $0x38] sm:$0xf]
        %v1087 = vld [vmem:[%s456 + $0x3c] sm:$0xf]
        %v1088 = vpack.c.bf16 %v1069, %v1068
        %v1089 = vpack.c.bf16 %v1071, %v1070
        %v1090 = vunpack.c.l.bf16 %v1088
        %v1091 = vunpack.c.h.bf16 %v1088
        %v1092 = vunpack.c.l.bf16 %v1089
        %v1093 = vunpack.c.h.bf16 %v1089
        %v1094 = vsub.f32 %v1068, %v1090
        %v1095 = vsub.f32 %v1069, %v1091
        %v1096 = vsub.f32 %v1070, %v1092
        %v1097 = vsub.f32 %v1071, %v1093
        %v1098 = vpack.c.bf16 %v1095, %v1094
        %v1099 = vpack.c.bf16 %v1097, %v1096
        %v1116 = vunpack.c.l.b16 %v1072
        %v1117 = vunpack.c.l.b16 %v1073
        %v1118 = vunpack.c.l.b16 %v1074
        %v1119 = vunpack.c.l.b16 %v1075
        %v1120 = vunpack.c.l.b16 %v1076
        %v1121 = vunpack.c.l.b16 %v1077
        %v1122 = vunpack.c.l.b16 %v1078
        %v1123 = vunpack.c.l.b16 %v1079
        %v1124 = vunpack.c.l.b16 %v1080
        %v1125 = vunpack.c.l.b16 %v1081
        %v1126 = vunpack.c.l.b16 %v1082
        %v1127 = vunpack.c.l.b16 %v1083
        %v1128 = vunpack.c.l.b16 %v1084
        %v1129 = vunpack.c.l.b16 %v1085
        %v1130 = vunpack.c.l.b16 %v1086
        %v1131 = vunpack.c.l.b16 %v1087
        %v1132 = vpack.c.b16 %v1117, %v1116
        %v1133 = vpack.c.b16 %v1119, %v1118
        %v1134 = vpack.c.b16 %v1121, %v1120
        %v1135 = vpack.c.b16 %v1123, %v1122
        %v1136 = vpack.c.b16 %v1125, %v1124
        %v1137 = vpack.c.b16 %v1127, %v1126
        %v1138 = vpack.c.b16 %v1129, %v1128
        %v1139 = vpack.c.b16 %v1131, %v1130
        %1148 = vmatprep.subr.bf16.mxu0 0
        %1149 = vmatpush1.bf16.msra.mxu0 %v1132
        %1150 = vmatprep.subr.bf16.mxu0 0
        %1151 = vmatpush1.bf16.msra.mxu0 %v1133
        %1152 = vmatprep.subr.bf16.mxu0 0
        %1153 = vmatpush1.bf16.msra.mxu0 %v1134
        %1154 = vmatprep.subr.bf16.mxu0 0
        %1155 = vmatpush1.bf16.msra.mxu0 %v1135
        %1156 = vmatprep.subr.bf16.mxu0 0
        %1157 = vmatpush1.bf16.msra.mxu0 %v1136
        %1158 = vmatprep.subr.bf16.mxu0 0
        %1159 = vmatpush1.bf16.msra.mxu0 %v1137
        %1160 = vmatprep.subr.bf16.mxu0 0
        %1161 = vmatpush1.bf16.msra.mxu0 %v1138
        %1162 = vmatprep.subr.bf16.mxu0 0
        %1163 = vmatpush1.bf16.msra.mxu0 %v1139
        %1164 = vmatprep.subr.bf16.mxu0 0
        %1165 = vmatpush1.bf16.msra.mxu0 0
        %1166 = vmatprep.subr.bf16.mxu0 0
        %1167 = vmatpush1.bf16.msra.mxu0 0
        %1168 = vmatprep.subr.bf16.mxu0 0
        %1169 = vmatpush1.bf16.msra.mxu0 0
        %1170 = vmatprep.subr.bf16.mxu0 0
        %1171 = vmatpush1.bf16.msra.mxu0 0
        %1172 = vmatprep.subr.bf16.mxu0 0
        %1173 = vmatpush1.bf16.msra.mxu0 0
        %1174 = vmatprep.subr.bf16.mxu0 0
        %1175 = vmatpush1.bf16.msra.mxu0 0
        %1176 = vmatprep.subr.bf16.mxu0 0
        %1177 = vmatpush1.bf16.msra.mxu0 0
        %1178 = vmatprep.subr.bf16.mxu0 0
        %1179 = vmatpush1.bf16.msra.mxu0 0
        %1180 = vmatprep.mubr.bf16.mxu0 0
        %1181 = vmatmul.mubr.bf16.gmra.mrb[0].mxu0 %v1098
        %v1182 = vpop.f32.mrb[0].mxu0
        %v1183 = vadd.f32 0.0, %v1182
        %v1184 = vpop.f32.mrb[0].mxu0
        %v1185 = vpop.f32.mrb[0].mxu0
        %v1186 = vadd.f32 0.0, %v1185
        %v1187 = vpop.f32.mrb[0].mxu0
        %1188 = vmatprep.mubr.bf16.mxu0 0
        %1189 = vmatmul.mubr.bf16.gmra.mrb[0].mxu0 %v1099
        %v1190 = vpop.f32.mrb[0].mxu0
        %v1191 = vadd.f32 0.0, %v1190
        %v1192 = vpop.f32.mrb[0].mxu0
        %v1193 = vpop.f32.mrb[0].mxu0
        %v1194 = vadd.f32 0.0, %v1193
        %v1195 = vpop.f32.mrb[0].mxu0
        %1196 = vdwg.mxu0
        %1197 = vmatprep.subr.bf16.mxu0 0
        %1198 = vmatpush1.bf16.msra.mxu0 %v1132
        %1199 = vmatprep.subr.bf16.mxu0 0
        %1200 = vmatpush1.bf16.msra.mxu0 %v1133
        %1201 = vmatprep.subr.bf16.mxu0 0
        %1202 = vmatpush1.bf16.msra.mxu0 %v1134
        %1203 = vmatprep.subr.bf16.mxu0 0
        %1204 = vmatpush1.bf16.msra.mxu0 %v1135
        %1205 = vmatprep.subr.bf16.mxu0 0
        %1206 = vmatpush1.bf16.msra.mxu0 %v1136
        %1207 = vmatprep.subr.bf16.mxu0 0
        %1208 = vmatpush1.bf16.msra.mxu0 %v1137
        %1209 = vmatprep.subr.bf16.mxu0 0
        %1210 = vmatpush1.bf16.msra.mxu0 %v1138
        %1211 = vmatprep.subr.bf16.mxu0 0
        %1212 = vmatpush1.bf16.msra.mxu0 %v1139
        %1213 = vmatprep.subr.bf16.mxu0 0
        %1214 = vmatpush1.bf16.msra.mxu0 0
        %1215 = vmatprep.subr.bf16.mxu0 0
        %1216 = vmatpush1.bf16.msra.mxu0 0
        %1217 = vmatprep.subr.bf16.mxu0 0
        %1218 = vmatpush1.bf16.msra.mxu0 0
        %1219 = vmatprep.subr.bf16.mxu0 0
        %1220 = vmatpush1.bf16.msra.mxu0 0
        %1221 = vmatprep.subr.bf16.mxu0 0
        %1222 = vmatpush1.bf16.msra.mxu0 0
        %1223 = vmatprep.subr.bf16.mxu0 0
        %1224 = vmatpush1.bf16.msra.mxu0 0
        %1225 = vmatprep.subr.bf16.mxu0 0
        %1226 = vmatpush1.bf16.msra.mxu0 0
        %1227 = vmatprep.subr.bf16.mxu0 0
        %1228 = vmatpush1.bf16.msra.mxu0 0
        %1229 = vmatprep.mubr.bf16.mxu0 0
        %1230 = vmatmul.mubr.bf16.gmra.mrb[0].mxu0 %v1088
        %v1231 = vpop.f32.mrb[0].mxu0
        %v1232 = vadd.f32 %v1183, %v1231
        %v1233 = vpop.f32.mrb[0].mxu0
        %v1234 = vpop.f32.mrb[0].mxu0
        %v1235 = vadd.f32 %v1186, %v1234
        %v1236 = vpop.f32.mrb[0].mxu0
        %1237 = vmatprep.mubr.bf16.mxu0 0
        %1238 = vmatmul.mubr.bf16.gmra.mrb[0].mxu0 %v1089
        %v1239 = vpop.f32.mrb[0].mxu0
        %v1240 = vadd.f32 %v1191, %v1239
        %v1241 = vpop.f32.mrb[0].mxu0
        %v1242 = vpop.f32.mrb[0].mxu0
        %v1243 = vadd.f32 %v1194, %v1242
        %v1244 = vpop.f32.mrb[0].mxu0
        %1245 = vdwg.mxu0
        %v1246 = vld [vmem:[%s6] sm:$0xff]
        %v1247 = vld [vmem:[%s6 + $0x8] sm:$0xff]
        %v1248 = vld [vmem:[%s6 + $0x10] sm:$0xff]
        %v1249 = vld [vmem:[%s6 + $0x18] sm:$0xff]
        %v1250 = vld [vmem:[%s388] sm:$0xff]
        %v1251 = vld [vmem:[%s388 + $0x8] sm:$0xff]
        %v1252 = vld [vmem:[%s388 + $0x10] sm:$0xff]
        %v1253 = vld [vmem:[%s388 + $0x18] sm:$0xff]
        %v1254 = vld [vmem:[%s388 + $0x20] sm:$0xff]
        %v1255 = vld [vmem:[#allocation6] sm:$0xff]
        %v1256 = vld [vmem:[#allocation6 + $0x8] sm:$0xff]
        %v1257 = vld [vmem:[#allocation6 + $0x10] sm:$0xff]
        %v1258 = vld [vmem:[#allocation6 + $0x18] sm:$0xff]
        %v1260 = vsel %vm763, %v1255, 0
        %v1263 = vsel %vm763, %v1256, 0
        %v1266 = vsel %vm763, %v1257, 0
        %v1269 = vsel %vm763, %v1258, 0
        %1271 = vmatprep.subr.mxu0 0.0
        %1272 = vmatpush1.msra.mxu0 %v1232
        %1273 = vmatprep.subr.mxu0 0.0
        %1274 = vmatpush1.msra.mxu0 %v1235
        %1275 = vmatprep.subr.mxu0 0.0
        %1276 = vmatpush1.msra.mxu0 %v1240
        %1277 = vmatprep.subr.mxu0 0.0
        %1278 = vmatpush1.msra.mxu0 %v1243
        %1279 = vmatprep.subr.mxu0 0.0
        %1280 = vmatpush1.msra.mxu0 0.0
        %1281 = vmatprep.subr.mxu0 0.0
        %1282 = vmatpush1.msra.mxu0 0.0
        %1283 = vmatprep.subr.mxu0 0.0
        %1284 = vmatpush1.msra.mxu0 0.0
        %1285 = vmatprep.subr.mxu0 0.0
        %1286 = vmatpush1.msra.mxu0 0.0
        %1287 = vmatprep.subr.mxu0 0.0
        %1288 = vmatpush1.msra.mxu0 0.0
        %1289 = vmatprep.subr.mxu0 0.0
        %1290 = vmatpush1.msra.mxu0 0.0
        %1291 = vmatprep.subr.mxu0 0.0
        %1292 = vmatpush1.msra.mxu0 0.0
        %1293 = vmatprep.subr.mxu0 0.0
        %1294 = vmatpush1.msra.mxu0 0.0
        %1295 = vmatprep.subr.mxu0 0.0
        %1296 = vmatpush1.msra.mxu0 0.0
        %1297 = vmatprep.subr.mxu0 0.0
        %1298 = vmatpush1.msra.mxu0 0.0
        %1299 = vmatprep.subr.mxu0 0.0
        %1300 = vmatpush1.msra.mxu0 0.0
        %1301 = vmatprep.subr.mxu0 0.0
        %1302 = vmatpush1.msra.mxu0 0.0
        %1303 = vmatprep.subr.mxu0 0.0
        %1304 = vmatpush1.msra.mxu0 0.0
        %1305 = vmatprep.subr.mxu0 0.0
        %1306 = vmatpush1.msra.mxu0 0.0
        %1307 = vmatprep.subr.mxu0 0.0
        %1308 = vmatpush1.msra.mxu0 0.0
        %1309 = vmatprep.subr.mxu0 0.0
        %1310 = vmatpush1.msra.mxu0 0.0
        %1311 = vmatprep.subr.mxu0 0.0
        %1312 = vmatpush1.msra.mxu0 0.0
        %1313 = vmatprep.subr.mxu0 0.0
        %1314 = vmatpush1.msra.mxu0 0.0
        %1315 = vmatprep.subr.mxu0 0.0
        %1316 = vmatpush1.msra.mxu0 0.0
        %1317 = vmatprep.subr.mxu0 0.0
        %1318 = vmatpush1.msra.mxu0 0.0
        %1319 = vmatprep.subr.mxu0 0.0
        %1320 = vmatpush1.msra.mxu0 0.0
        %1321 = vmatprep.subr.mxu0 0.0
        %1322 = vmatpush1.msra.mxu0 0.0
        %1323 = vmatprep.subr.mxu0 0.0
        %1324 = vmatpush1.msra.mxu0 0.0
        %1325 = vmatprep.subr.mxu0 0.0
        %1326 = vmatpush1.msra.mxu0 0.0
        %1327 = vmatprep.subr.mxu0 0.0
        %1328 = vmatpush1.msra.mxu0 0.0
        %1329 = vmatprep.subr.mxu0 0.0
        %1330 = vmatpush1.msra.mxu0 0.0
        %1331 = vmatprep.subr.mxu0 0.0
        %1332 = vmatpush1.msra.mxu0 0.0
        %1333 = vmatprep.subr.mxu0 0.0
        %1334 = vmatpush1.msra.mxu0 0.0
        %1335 = vmatprep.mubr.f32.mxu0 0.0
        %1336 = vmatmul.mubr.f32.gmra.mrb[0].mxu0 %v1260
        %v1337 = vpop.f32.mrb[0].mxu0
        %v1338 = vadd.f32 0.0, %v1337
        %v1339 = vpop.f32.mrb[0].mxu0
        %1340 = vmatprep.mubr.f32.mxu0 0.0
        %1341 = vmatmul.mubr.f32.gmra.mrb[0].mxu0 %v1263
        %v1342 = vpop.f32.mrb[0].mxu0
        %v1343 = vadd.f32 0.0, %v1342
        %v1344 = vpop.f32.mrb[0].mxu0
        %1345 = vmatprep.mubr.f32.mxu0 0.0
        %1346 = vmatmul.mubr.f32.gmra.mrb[0].mxu0 %v1266
        %v1347 = vpop.f32.mrb[0].mxu0
        %v1348 = vadd.f32 0.0, %v1347
        %v1349 = vpop.f32.mrb[0].mxu0
        %1350 = vmatprep.mubr.f32.mxu0 0.0
        %1351 = vmatmul.mubr.f32.gmra.mrb[0].mxu0 %v1269
        %v1352 = vpop.f32.mrb[0].mxu0
        %v1353 = vadd.f32 0.0, %v1352
        %v1354 = vpop.f32.mrb[0].mxu0
        %1355 = vdwg.mxu0
        %vm1356 = vcmask 326656
        %v1358 = vsel %vm1356, %v1246, 0
        %v1361 = vsel %vm1356, %v1247, 0
        %v1364 = vsel %vm1356, %v1248, 0
        %v1367 = vsel %vm1356, %v1249, 0
        %1369 = vmatprep.subr.mxu0 0.0
        %1370 = vmatpush1.msra.mxu0 %v1250
        %1371 = vmatprep.subr.mxu0 0.0
        %1372 = vmatpush1.msra.mxu0 %v1251
        %1373 = vmatprep.subr.mxu0 0.0
        %1374 = vmatpush1.msra.mxu0 %v1252
        %1375 = vmatprep.subr.mxu0 0.0
        %1376 = vmatpush1.msra.mxu0 %v1253
        %1377 = vmatprep.subr.mxu0 0.0
        %1378 = vmatpush1.msra.mxu0 %v1254
        %1379 = vmatprep.subr.mxu0 0.0
        %1380 = vmatpush1.msra.mxu0 0.0
        %1381 = vmatprep.subr.mxu0 0.0
        %1382 = vmatpush1.msra.mxu0 0.0
        %1383 = vmatprep.subr.mxu0 0.0
        %1384 = vmatpush1.msra.mxu0 0.0
        %1385 = vmatprep.subr.mxu0 0.0
        %1386 = vmatpush1.msra.mxu0 0.0
        %1387 = vmatprep.subr.mxu0 0.0
        %1388 = vmatpush1.msra.mxu0 0.0
        %1389 = vmatprep.subr.mxu0 0.0
        %1390 = vmatpush1.msra.mxu0 0.0
        %1391 = vmatprep.subr.mxu0 0.0
        %1392 = vmatpush1.msra.mxu0 0.0
        %1393 = vmatprep.subr.mxu0 0.0
        %1394 = vmatpush1.msra.mxu0 0.0
        %1395 = vmatprep.subr.mxu0 0.0
        %1396 = vmatpush1.msra.mxu0 0.0
        %1397 = vmatprep.subr.mxu0 0.0
        %1398 = vmatpush1.msra.mxu0 0.0
        %1399 = vmatprep.subr.mxu0 0.0
        %1400 = vmatpush1.msra.mxu0 0.0
        %1401 = vmatprep.subr.mxu0 0.0
        %1402 = vmatpush1.msra.mxu0 0.0
        %1403 = vmatprep.subr.mxu0 0.0
        %1404 = vmatpush1.msra.mxu0 0.0
        %1405 = vmatprep.subr.mxu0 0.0
        %1406 = vmatpush1.msra.mxu0 0.0
        %1407 = vmatprep.subr.mxu0 0.0
        %1408 = vmatpush1.msra.mxu0 0.0
        %1409 = vmatprep.subr.mxu0 0.0
        %1410 = vmatpush1.msra.mxu0 0.0
        %1411 = vmatprep.subr.mxu0 0.0
        %1412 = vmatpush1.msra.mxu0 0.0
        %1413 = vmatprep.subr.mxu0 0.0
        %1414 = vmatpush1.msra.mxu0 0.0
        %1415 = vmatprep.subr.mxu0 0.0
        %1416 = vmatpush1.msra.mxu0 0.0
        %1417 = vmatprep.subr.mxu0 0.0
        %1418 = vmatpush1.msra.mxu0 0.0
        %1419 = vmatprep.subr.mxu0 0.0
        %1420 = vmatpush1.msra.mxu0 0.0
        %1421 = vmatprep.subr.mxu0 0.0
        %1422 = vmatpush1.msra.mxu0 0.0
        %1423 = vmatprep.subr.mxu0 0.0
        %1424 = vmatpush1.msra.mxu0 0.0
        %1425 = vmatprep.subr.mxu0 0.0
        %1426 = vmatpush1.msra.mxu0 0.0
        %1427 = vmatprep.subr.mxu0 0.0
        %1428 = vmatpush1.msra.mxu0 0.0
        %1429 = vmatprep.subr.mxu0 0.0
        %1430 = vmatpush1.msra.mxu0 0.0
        %1431 = vmatprep.subr.mxu0 0.0
        %1432 = vmatpush1.msra.mxu0 0.0
        %1433 = vmatprep.mubr.f32.mxu0 0.0
        %1434 = vmatmul.mubr.f32.gmra.mrb[0].mxu0 %v1358
        %v1435 = vpop.f32.mrb[0].mxu0
        %v1436 = vadd.f32 %v1338, %v1435
        %v1437 = vpop.f32.mrb[0].mxu0
        %1438 = vmatprep.mubr.f32.mxu0 0.0
        %1439 = vmatmul.mubr.f32.gmra.mrb[0].mxu0 %v1361
        %v1440 = vpop.f32.mrb[0].mxu0
        %v1441 = vadd.f32 %v1343, %v1440
        %v1442 = vpop.f32.mrb[0].mxu0
        %1443 = vmatprep.mubr.f32.mxu0 0.0
        %1444 = vmatmul.mubr.f32.gmra.mrb[0].mxu0 %v1364
        %v1445 = vpop.f32.mrb[0].mxu0
        %v1446 = vadd.f32 %v1348, %v1445
        %v1447 = vpop.f32.mrb[0].mxu0
        %1448 = vmatprep.mubr.f32.mxu0 0.0
        %1449 = vmatmul.mubr.f32.gmra.mrb[0].mxu0 %v1367
        %v1450 = vpop.f32.mrb[0].mxu0
        %v1451 = vadd.f32 %v1353, %v1450
        %v1452 = vpop.f32.mrb[0].mxu0
        %1453 = vdwg.mxu0
        %v1454 = vmax.f32 %v1436, 0.0
        %v1455 = vmax.f32 %v1441, 0.0
        %v1456 = vmax.f32 %v1446, 0.0
        %v1457 = vmax.f32 %v1451, 0.0
        %v1458 = vld [vmem:[%s461] sm:$0xff]
        %v1459 = vld [vmem:[%s461 + $0x8] sm:$0xff]
        %v1460 = vld [vmem:[%s461 + $0x10] sm:$0xff]
        %v1461 = vld [vmem:[%s461 + $0x18] sm:$0xff]
        %v1462 = vld [vmem:[%s461 + $0x20] sm:$0xff]
        %v1463 = vld [vmem:[%s461 + $0x28] sm:$0xff]
        %v1464 = vld [vmem:[%s461 + $0x30] sm:$0xff]
        %v1465 = vld [vmem:[%s461 + $0x38] sm:$0xff]
        %v1466 = vld [vmem:[%s461 + $0x40] sm:$0xff]
        %v1467 = vld [vmem:[%s461 + $0x48] sm:$0xff]
        %v1468 = vld [vmem:[%s461 + $0x50] sm:$0xff]
        %v1469 = vld [vmem:[%s461 + $0x58] sm:$0xff]
        %v1470 = vld [vmem:[%s461 + $0x60] sm:$0xff]
        %v1471 = vld [vmem:[%s461 + $0x68] sm:$0xff]
        %v1472 = vld [vmem:[%s461 + $0x70] sm:$0xff]
        %v1473 = vld [vmem:[%s461 + $0x78] sm:$0xff]
        %1474 = vmatprep.subr.mxu0 0.0
        %1475 = vmatpush1.msra.mxu0 %v1458
        %1476 = vmatprep.subr.mxu0 0.0
        %1477 = vmatpush1.msra.mxu0 %v1459
        %1478 = vmatprep.subr.mxu0 0.0
        %1479 = vmatpush1.msra.mxu0 %v1460
        %1480 = vmatprep.subr.mxu0 0.0
        %1481 = vmatpush1.msra.mxu0 %v1461
        %1482 = vmatprep.subr.mxu0 0.0
        %1483 = vmatpush1.msra.mxu0 %v1462
        %1484 = vmatprep.subr.mxu0 0.0
        %1485 = vmatpush1.msra.mxu0 %v1463
        %1486 = vmatprep.subr.mxu0 0.0
        %1487 = vmatpush1.msra.mxu0 %v1464
        %1488 = vmatprep.subr.mxu0 0.0
        %1489 = vmatpush1.msra.mxu0 %v1465
        %1490 = vmatprep.subr.mxu0 0.0
        %1491 = vmatpush1.msra.mxu0 %v1466
        %1492 = vmatprep.subr.mxu0 0.0
        %1493 = vmatpush1.msra.mxu0 %v1467
        %1494 = vmatprep.subr.mxu0 0.0
        %1495 = vmatpush1.msra.mxu0 %v1468
        %1496 = vmatprep.subr.mxu0 0.0
        %1497 = vmatpush1.msra.mxu0 %v1469
        %1498 = vmatprep.subr.mxu0 0.0
        %1499 = vmatpush1.msra.mxu0 %v1470
        %1500 = vmatprep.subr.mxu0 0.0
        %1501 = vmatpush1.msra.mxu0 %v1471
        %1502 = vmatprep.subr.mxu0 0.0
        %1503 = vmatpush1.msra.mxu0 %v1472
        %1504 = vmatprep.subr.mxu0 0.0
        %1505 = vmatpush1.msra.mxu0 %v1473
        %1506 = vmatprep.subr.mxu0 0.0
        %1507 = vmatpush1.msra.mxu0 0.0
        %1508 = vmatprep.subr.mxu0 0.0
        %1509 = vmatpush1.msra.mxu0 0.0
        %1510 = vmatprep.subr.mxu0 0.0
        %1511 = vmatpush1.msra.mxu0 0.0
        %1512 = vmatprep.subr.mxu0 0.0
        %1513 = vmatpush1.msra.mxu0 0.0
        %1514 = vmatprep.subr.mxu0 0.0
        %1515 = vmatpush1.msra.mxu0 0.0
        %1516 = vmatprep.subr.mxu0 0.0
        %1517 = vmatpush1.msra.mxu0 0.0
        %1518 = vmatprep.subr.mxu0 0.0
        %1519 = vmatpush1.msra.mxu0 0.0
        %1520 = vmatprep.subr.mxu0 0.0
        %1521 = vmatpush1.msra.mxu0 0.0
        %1522 = vmatprep.subr.mxu0 0.0
        %1523 = vmatpush1.msra.mxu0 0.0
        %1524 = vmatprep.subr.mxu0 0.0
        %1525 = vmatpush1.msra.mxu0 0.0
        %1526 = vmatprep.subr.mxu0 0.0
        %1527 = vmatpush1.msra.mxu0 0.0
        %1528 = vmatprep.subr.mxu0 0.0
        %1529 = vmatpush1.msra.mxu0 0.0
        %1530 = vmatprep.subr.mxu0 0.0
        %1531 = vmatpush1.msra.mxu0 0.0
        %1532 = vmatprep.subr.mxu0 0.0
        %1533 = vmatpush1.msra.mxu0 0.0
        %1534 = vmatprep.subr.mxu0 0.0
        %1535 = vmatpush1.msra.mxu0 0.0
        %1536 = vmatprep.subr.mxu0 0.0
        %1537 = vmatpush1.msra.mxu0 0.0
        %1538 = vmatprep.mubr.f32.mxu0 0.0
        %1539 = vmatmul.mubr.f32.gmra.mrb[0].mxu0 %v1454
        %v1540 = vpop.f32.mrb[0].mxu0
        %v1541 = vadd.f32 0.0, %v1540
        %v1542 = vpop.f32.mrb[0].mxu0
        %1543 = vmatprep.mubr.f32.mxu0 0.0
        %1544 = vmatmul.mubr.f32.gmra.mrb[0].mxu0 %v1455
        %v1545 = vpop.f32.mrb[0].mxu0
        %v1546 = vadd.f32 0.0, %v1545
        %v1547 = vpop.f32.mrb[0].mxu0
        %1548 = vmatprep.mubr.f32.mxu0 0.0
        %1549 = vmatmul.mubr.f32.gmra.mrb[0].mxu0 %v1456
        %v1550 = vpop.f32.mrb[0].mxu0
        %v1551 = vadd.f32 0.0, %v1550
        %v1552 = vpop.f32.mrb[0].mxu0
        %1553 = vmatprep.mubr.f32.mxu0 0.0
        %1554 = vmatmul.mubr.f32.gmra.mrb[0].mxu0 %v1457
        %v1555 = vpop.f32.mrb[0].mxu0
        %v1556 = vadd.f32 0.0, %v1555
        %v1557 = vpop.f32.mrb[0].mxu0
        %1558 = vdwg.mxu0
        %vm1559 = vcmask 130048
        %1560 = vst.msk [vmem:[%s466] sm:$0xff] %vm1559, %v1541
        %1561 = vst.msk [vmem:[%s466 + $0x8] sm:$0xff] %vm1559, %v1546
        %1562 = vst.msk [vmem:[%s466 + $0x10] sm:$0xff] %vm1559, %v1551
        %1563 = vst.msk [vmem:[%s466 + $0x18] sm:$0xff] %vm1559, %v1556
        %p1564 = scmp.lt.s32.totalorder %s26, 5
        %s1565 = scalar_select %p1564, %s26, 5
        %s1566 = smul.addr %s1565, 4
        %s1567 = smul.addr %s1566, 8
        %s1568 = scalar_lea.vmem %s9, %s1567
        // Predicated region
        $region69: #{tpu_custom_call.1} parent=55 // pred_check
          %p1569 = pneg %p258
        $region70: #{tpu_custom_call.1} parent=55 // pred_check_branch
          %1571 = sbr.rel (%p1569) target = $region72
        $region71: #{tpu_custom_call.1} parent=55 // pred_region
          _
        $region72: #{tpu_custom_call.1} parent=55 // pred_fallthru
          _
      $region56: #{tpu_custom_call.1} parent=5 // pred_fallthru
        _
      %p1572 = scmp.le.s32.totalorder 2, %s21
      // Predicated region
      $region73: #{tpu_custom_call.1} parent=5 // pred_check
        %p1573 = pneg %p1572
      $region74: #{tpu_custom_call.1} parent=5 // pred_check_branch
        %1575 = sbr.rel (%p1573) target = $region76
      $region75: #{tpu_custom_call.1} parent=5 // pred_region
        %s1576 = ssub.s32 %s21, 2
        // Predicated region
        $region77: #{tpu_custom_call.1} parent=75 // pred_check
          %p1577 = pneg %p264
        $region78: #{tpu_custom_call.1} parent=75 // pred_check_branch
          %1579 = sbr.rel (%p1577) target = $region80
        $region79: #{tpu_custom_call.1} parent=75 // pred_region
          %p1580 = scmp.lt.s32.totalorder %s27, 5
          %s1581 = scalar_select %p1580, %s27, 5
          %s1582 = smul.addr %s1581, 4
          %s1583 = smul.addr %s1582, 8
          %s1584 = scalar_lea.vmem %s9, %s1583
        $region80: #{tpu_custom_call.1} parent=75 // pred_fallthru
          _
      $region76: #{tpu_custom_call.1} parent=5 // pred_fallthru
        _
    $region6: #{tpu_custom_call.1} parent=1 // loop_footer
      %s25 = sadd.s32 1, %s21
    $region7: #{tpu_custom_call.1} parent=1 // loop_footer_branch
      %20 = sbr.rel target = $region3
    $region8: #{tpu_custom_call.1} parent=1 // loop_exit
      _
    %1585 = vsyncpa [#allocation3], 1
    %s1586 = scalar_lea.sflag [#allocation3], 1
    %1587 = vsyncpa %s1586, 1
    %1588 = vsyncpa [#allocation5], 1
    %s1589 = scalar_lea.sflag [#allocation5], 1
    %1590 = vsyncpa %s1589, 1

</llo_original>
